<compile_context>
chip_gen: v6e
topology: v6e:2x2x1
jax: 0.10.0
libtpu: 0.0.40
codegen_flags: <defaults>
</compile_context>

<pallas_src>
import functools

import jax
import jax.numpy as jnp
import numpy as np
from jax import lax
from jax.experimental import pallas as pl
from jax.experimental.pallas import tpu as pltpu

CONFIG = {
    "num_units": 128,          # hidden size (lane-aligned)
    "sparsity": 4,             # k
    "inhibition_decay": 0.5,
    "knockout_rate": 0.25,
    "init_scale": 1.0,
    "use_stub": False,
    "unique_mode": False,      # TODO(synk): unique_mode (torch.unique dedup) path not implemented
    "norm_inputs": True,
}

BLOCK_K = 16384        # contraction tile: rows of W^T streamed per grid step
MAX_UNROLL_BATCH = 32  # statically unroll the sequential batch loop up to here


def _round_up(x, m):
    return (x + m - 1) // m * m


def _pick_block_k(d, requested, h, wt_bytes):
    """Largest usable K tile: multiple of 128, <= D (rounded), and capped so the
    double-buffered W^T stream stays <= ~32 MiB (v7x's 64 MiB VMEM safe)."""
    requested = max(128, _round_up(int(requested), 128))
    cap = max(128, ((32 << 20) // (2 * int(h) * int(wt_bytes))) // 128 * 128)
    return min(requested, cap, _round_up(int(d), 128))


def _vmem_limit_bytes(b, blk, h, wt_bytes):
    need = (2 * blk * h * wt_bytes       # double-buffered W^T stream
            + 2 * b * blk * 4            # double-buffered x K-tiles
            + 2 * h * 4                  # colsum
            + 2 * b * h * 4              # output block
            + b * h * 4 + 1024)          # accumulator + stat scratches
    return int(min(max(need + (8 << 20), 32 << 20), 100 << 20))


def _topk_mask(vals, ids, k):
    """k-hot mask of the k largest entries per row of `vals` ((R,H) f32).
    Ties break to the lowest index (torch.topk-style). `ids` is a hoisted
    int32 lane iota of the same shape (don't rebuild per call-site loop)."""
    # NOTE: argmax would halve the XLU reductions here; kept as max + min-index
    # which is known to lower cleanly in Mosaic.
    h = vals.shape[-1]
    mask = jnp.zeros_like(vals)
    vv = vals
    for _ in range(k):                 # k is small & static -> unrolled
        m = jnp.max(vv, axis=-1, keepdims=True)
        idx = jnp.min(jnp.where(vv == m, ids, jnp.int32(h)),
                      axis=-1, keepdims=True)
        sel = ids == idx
        mask = mask + sel.astype(vals.dtype)
        vv = jnp.where(sel, -jnp.inf, vv)
    return mask


# ------------------------------------------------------------------- kernel
def dg_kernel(x_ref, wt_ref, colsum_ref, out_ref, acc_ref, min_sc, max_sc, *,
              k, decay, norm_inputs, batch, unroll):
    """Grid axis 0 walks the contraction (D) in block_k chunks.

    x_ref      : VMEM (B, blk)      K-tile of the flattened inputs
    wt_ref     : VMEM (blk, H)      streamed K-tile of W^T
    colsum_ref : VMEM (1, H) f32    precomputed column sums of W^T
    out_ref    : VMEM (B, H) f32    final top-k mask (written on last step)
    acc_ref    : VMEM (B, H) f32    matmul accumulator (persists across steps)
    min_sc/max_sc : VMEM (1,1) f32  running global min / max of the inputs
    """
    kk = pl.program_id(0)
    nk = pl.num_programs(0)

    x_tile = x_ref[...]

    @pl.when(kk == 0)
    def _init():
        acc_ref[...] = jnp.zeros_like(acc_ref)

    if norm_inputs:
        # Per-tile min/max folded into the K-streaming loop (x is already in
        # VMEM) -> no separate wrapper-side reduction pass over HBM.
        t_min = jnp.min(jnp.min(x_tile, axis=1, keepdims=True),
                        axis=0, keepdims=True)
        t_max = jnp.max(jnp.max(x_tile, axis=1, keepdims=True),
                        axis=0, keepdims=True)

        @pl.when(kk == 0)
        def _stats_init():
            min_sc[...] = t_min
            max_sc[...] = t_max

        @pl.when(kk > 0)
        def _stats_update():
            min_sc[...] = jnp.minimum(min_sc[...], t_min)
            max_sc[...] = jnp.maximum(max_sc[...], t_max)

    # MXU: accumulate this K tile.
    x_mm = x_tile if x_tile.dtype == wt_ref.dtype else x_tile.astype(wt_ref.dtype)
    acc_ref[...] += jnp.dot(x_mm, wt_ref[...],
                            preferred_element_type=jnp.float32)

    @pl.when(kk == nk - 1)
    def _finalize():
        h = out_ref.shape[1]
        # Hoisted int32 lane iotas (JAX doesn't CSE broadcasts).
        ids_row = lax.broadcasted_iota(jnp.int32, (1, h), 1)
        ids_blk = lax.broadcasted_iota(jnp.int32, (batch, h), 1)

        if norm_inputs:
            # Fold (x - xmin)/(xmax - xmin) into a post-matmul correction:
            #   enc = (x @ Wt - xmin * colsum(Wt)) / (xmax - xmin)
            xmin = min_sc[...]                            # (1,1)
            inv_range = 1.0 / (max_sc[...] - xmin)        # Inf/NaN for constant input (matches torch)
            enc = (acc_ref[...] - xmin * colsum_ref[...]) * inv_range
        else:
            enc = acc_ref[...]

        if unroll:
            # Normalization + abs done once on the dense (B,H) block; only the
            # inhibition recurrence + per-row top-k stay in the serial chain.
            abs_enc = jnp.abs(enc)
            inhibition = jnp.zeros((1, h), jnp.float32)
            for i in range(batch):                         # static unroll
                refracted = abs_enc[i:i + 1, :] * (1.0 - inhibition)
                mask_i = _topk_mask(refracted, ids_row, k)
                out_ref[i:i + 1, :] = enc[i:i + 1, :] * mask_i
                inhibition = inhibition * decay + mask_i
        else:
            # Large-batch fallback: dynamic row slices over the normalized
            # encoding kept in the accumulator scratch.
            acc_ref[...] = enc

            def body(i, inhibition):
                row = acc_ref[pl.ds(i, 1), :]              # (1, H)
                refracted = jnp.abs(row) * (1.0 - inhibition)
                mask_i = _topk_mask(refracted, ids_row, k)
                out_ref[pl.ds(i, 1), :] = row * mask_i
                return inhibition * decay + mask_i

            lax.fori_loop(0, batch, body, jnp.zeros((1, h), jnp.float32))

        # Batched second top-k (independent of the recurrence): one vectorized
        # pass over the whole (B,H) block + a single lane-dense store.
        out_ref[...] = _topk_mask(out_ref[...], ids_blk, k)


# ------------------------------------------------------------------ wrapper
def prepare_dg_weight(weight, *, block_k=BLOCK_K, dtype=jnp.float32):
    """One-time weight prep (call at init, not per forward):
      * W^T (D,H), zero-padded along D so the contraction tiles evenly,
      * colsum(W^T) (1,H) in f32 for the folded input normalization.
    `dtype=jnp.bfloat16` is an opt-in that halves the dominant HBM stream;
    f32 default avoids top-k tie flips vs. the reference."""
    h, d = weight.shape
    wt_bytes = jnp.dtype(dtype).itemsize
    blk = _pick_block_k(d, block_k, h, wt_bytes)
    d_pad = _round_up(d, blk)
    w32 = jnp.asarray(weight, jnp.float32)
    colsum = jnp.sum(w32, axis=1)[None, :]                 # (1, H) f32
    wt = w32.T                                             # (D, H)
    if d_pad != d:
        wt = jnp.pad(wt, ((0, d_pad - d), (0, 0)))
    return wt.astype(dtype), colsum


def dg_forward(inputs, wt_padded, colsum, *, config, block_k=BLOCK_K):
    """inputs: (B, C, H, W) float32; wt_padded/colsum from prepare_dg_weight."""
    b = int(inputs.shape[0])
    d = int(np.prod(inputs.shape[1:]))
    h = int(config["num_units"])
    k = int(config["sparsity"])

    if config.get("use_stub"):
        # Non-overlapping k-hot rows; constant pattern, no kernel needed.
        assert b * k - 1 + k < h
        lanes = jnp.arange(h)[None, :]
        start = (jnp.arange(b) * k)[:, None]
        return ((lanes >= start) & (lanes < start + k)).astype(jnp.float32)

    # TODO(synk): unique_mode (torch.unique dedup) filter path not implemented.

    norm = bool(config.get("norm_inputs", False))
    decay = float(config["inhibition_decay"])
    wt_bytes = jnp.dtype(wt_padded.dtype).itemsize
    blk = _pick_block_k(d, block_k, h, wt_bytes)
    d_pad = _round_up(d, blk)
    assert wt_padded.shape == (d_pad, h), (wt_padded.shape, d_pad, h)
    assert colsum.shape == (1, h), colsum.shape
    nk = d_pad // blk

    x2 = inputs.reshape(b, d).astype(jnp.float32)
    if d_pad != d:
        # Pad with a replicated real input value: W^T pad rows are zero so the
        # matmul is unaffected, and the in-kernel min/max stays exact.
        pad = jnp.broadcast_to(x2[:1, :1], (b, d_pad - d))
        x2 = jnp.concatenate([x2, pad], axis=1)

    unroll = b <= MAX_UNROLL_BATCH
    kernel = functools.partial(dg_kernel, k=k, decay=decay, norm_inputs=norm,
                               batch=b, unroll=unroll)
    # NOTE(v7x): the matmul stage could be split-K across both TensorCores for
    # very large D; the inhibition recurrence itself is inherently sequential.
    return pl.pallas_call(
        kernel,
        out_shape=jax.ShapeDtypeStruct((b, h), jnp.float32),
        grid=(nk,),
        in_specs=[
            pl.BlockSpec((b, blk), lambda kk: (0, kk)),    # x K-tile
            pl.BlockSpec((blk, h), lambda kk: (kk, 0)),    # W^T K-tile (stream)
            pl.BlockSpec((1, h), lambda kk: (0, 0)),       # colsum (resident)
        ],
        out_specs=pl.BlockSpec((b, h), lambda kk: (0, 0)),
        scratch_shapes=[pltpu.VMEM((b, h), jnp.float32),   # matmul accumulator
                        pltpu.VMEM((1, 1), jnp.float32),   # running min
                        pltpu.VMEM((1, 1), jnp.float32)],  # running max
        compiler_params=pltpu.CompilerParams(
            dimension_semantics=("arbitrary",),
            vmem_limit_bytes=_vmem_limit_bytes(b, blk, h, wt_bytes)),
    )(x2, wt_padded, colsum)


# ----------------------------------------------------------- pure-JAX reference
def _topk_mask_ref(values, k):
    _, idx = lax.top_k(values, k)
    return jnp.sum(jax.nn.one_hot(idx, values.shape[-1], dtype=values.dtype),
                   axis=-2)


def dg_reference(inputs, weight, *, config):
    """Pure-JAX mirror of the PyTorch DG.forward (apply_sparse_filter path)."""
    b = inputs.shape[0]
    d = int(np.prod(inputs.shape[1:]))
    h = int(config["num_units"])
    k = int(config["sparsity"])
    decay = float(config["inhibition_decay"])
    x = inputs.reshape(b, d).astype(jnp.float32)
    if config.get("norm_inputs"):
        x = (x - jnp.min(x)) / (jnp.max(x) - jnp.min(x))
    enc = x @ jnp.asarray(weight, jnp.float32).T             # (B, H)
    inhibition = jnp.zeros((h,), jnp.float32)
    filtered = jnp.zeros((b, h), jnp.float32)
    for i in range(b):
        refracted = jnp.abs(enc[i]) * (1.0 - inhibition)
        mask_i = _topk_mask_ref(refracted, k)
        filtered = filtered.at[i].set(enc[i] * mask_i)
        inhibition = inhibition * decay + mask_i
    return _topk_mask_ref(filtered, k)


# -------------------------------------------------------- weight init (init)
def init_dg_weight(key, input_size, config):
    """Replicates DG.reset_parameters: uniform * bernoulli-knockout * scale,
    then L1-normalized per output unit."""
    h = int(config["num_units"])
    k1, k2 = jax.random.split(key)
    n = h * input_size
    rv = jax.random.uniform(k1, (n,), dtype=jnp.float32)
    keep = (jax.random.uniform(k2, (n,), dtype=jnp.float32)
            < (1.0 - config["knockout_rate"])).astype(jnp.float32)
    w = (rv * keep * config["init_scale"]).reshape(h, input_size)
    abs_sum = jnp.sum(jnp.abs(w), axis=1, keepdims=True)
    return w * (1.0 / abs_sum)


# --------------------------------------------------------------------- main
if __name__ == "__main__":
    key = jax.random.PRNGKey(0)
    kx, kw = jax.random.split(key)

    B, C, H_IMG, W_IMG = 2, 4, 16, 16
    x = jax.random.uniform(kx, (B, C, H_IMG, W_IMG), dtype=jnp.float32)

    D = C * H_IMG * W_IMG
    weight = init_dg_weight(kw, D, CONFIG)                       # (num_units, D)
    wt_padded, colsum = prepare_dg_weight(weight, block_k=BLOCK_K)   # once, at init

    fwd = jax.jit(lambda xin, wt, cs: dg_forward(xin, wt, cs, config=CONFIG,
                                                 block_k=BLOCK_K))
    out = jax.block_until_ready(fwd(x, wt_padded, colsum))

    ref = dg_reference(x, weight, config=CONFIG)
    np.testing.assert_allclose(np.asarray(out), np.asarray(ref), atol=1e-6)

    # each row of the output mask must be exactly k-hot
    row_sums = np.asarray(out).sum(axis=-1)
    assert np.all(row_sums == CONFIG["sparsity"]), row_sums

    print("KERNEL_OK")
</pallas_src>

<mosaic_0001>
module attributes {stable_mosaic.version = 11 : i64} {
  func.func @dg_kernel(%arg0: i32, %arg1: memref<2x1024xf32, #tpu.memory_space<vmem>>, %arg2: memref<1024x128xf32, #tpu.memory_space<vmem>>, %arg3: memref<1x128xf32, #tpu.memory_space<vmem>>, %arg4: memref<2x128xf32, #tpu.memory_space<vmem>>, %arg5: memref<2x128xf32, #tpu.memory_space<vmem>>, %arg6: memref<1x1xf32, #tpu.memory_space<vmem>>, %arg7: memref<1x1xf32, #tpu.memory_space<vmem>>) attributes {dimension_semantics = [#tpu.dimension_semantics<arbitrary>], iteration_bounds = array<i64: 1>, scalar_prefetch = 0 : i64, scratch_operands = 3 : i64, tpu.core_type = #tpu.core_type<tc>, window_params = [{transform_indices = @transform_0, window_bounds = array<i64: 2, 1024>}, {transform_indices = @transform_1, window_bounds = array<i64: 1024, 128>}, {pipeline_mode = #tpu.pipeline_mode<synchronous>, transform_indices = @transform_2, window_bounds = array<i64: 1, 128>}, {pipeline_mode = #tpu.pipeline_mode<synchronous>, transform_indices = @transform_3, window_bounds = array<i64: 2, 128>}]} {
    %c0 = arith.constant 0 : index
    %c0_0 = arith.constant 0 : index
    %0 = vector.load %arg1[%c0, %c0_0] : memref<2x1024xf32, #tpu.memory_space<vmem>>, vector<2x1024xf32>
    %c0_i32 = arith.constant 0 : i32
    %1 = arith.cmpi eq, %arg0, %c0_i32 : i32
    %2 = arith.extui %1 : i1 to i32
    %c0_i32_1 = arith.constant 0 : i32
    %3 = arith.cmpi ne, %2, %c0_i32_1 : i32
    scf.if %3 {
      %cst_18 = arith.constant 0.000000e+00 : f32
      %26 = vector.broadcast %cst_18 : f32 to vector<2x128xf32>
      %c0_19 = arith.constant 0 : index
      %c0_20 = arith.constant 0 : index
      %27 = vector.load %arg5[%c0_19, %c0_20] : memref<2x128xf32, #tpu.memory_space<vmem>>, vector<2x128xf32>
      tpu.vector_store %arg5[%c0_19, %c0_20], %26 {strides = array<i32>} : memref<2x128xf32, #tpu.memory_space<vmem>>, vector<2x128xf32>,
    } else {
    }
    %cst = arith.constant dense<0x7F800000> : vector<2xf32>
    %4 = vector.multi_reduction <minimumf>, %0, %cst [1] : vector<2x1024xf32> to vector<2xf32>
    %5 = vector.shape_cast %4 : vector<2xf32> to vector<2x1xf32>
    %cst_2 = arith.constant dense<0x7F800000> : vector<1xf32>
    %6 = vector.multi_reduction <minimumf>, %5, %cst_2 [0] : vector<2x1xf32> to vector<1xf32>
    %7 = vector.shape_cast %6 : vector<1xf32> to vector<1x1xf32>
    %cst_3 = arith.constant dense<0xFF800000> : vector<2xf32>
    %8 = vector.multi_reduction <maximumf>, %0, %cst_3 [1] : vector<2x1024xf32> to vector<2xf32>
    %9 = vector.shape_cast %8 : vector<2xf32> to vector<2x1xf32>
    %cst_4 = arith.constant dense<0xFF800000> : vector<1xf32>
    %10 = vector.multi_reduction <maximumf>, %9, %cst_4 [0] : vector<2x1xf32> to vector<1xf32>
    %11 = vector.shape_cast %10 : vector<1xf32> to vector<1x1xf32>
    %c0_i32_5 = arith.constant 0 : i32
    %12 = arith.cmpi eq, %arg0, %c0_i32_5 : i32
    %13 = arith.extui %12 : i1 to i32
    %c0_i32_6 = arith.constant 0 : i32
    %14 = arith.cmpi ne, %13, %c0_i32_6 : i32
    scf.if %14 {
      %c0_18 = arith.constant 0 : index
      %c0_19 = arith.constant 0 : index
      %26 = vector.load %arg6[%c0_18, %c0_19] : memref<1x1xf32, #tpu.memory_space<vmem>>, vector<1x1xf32>
      tpu.vector_store %arg6[%c0_18, %c0_19], %7 {strides = array<i32>} : memref<1x1xf32, #tpu.memory_space<vmem>>, vector<1x1xf32>,
      %c0_20 = arith.constant 0 : index
      %c0_21 = arith.constant 0 : index
      %27 = vector.load %arg7[%c0_20, %c0_21] : memref<1x1xf32, #tpu.memory_space<vmem>>, vector<1x1xf32>
      tpu.vector_store %arg7[%c0_20, %c0_21], %11 {strides = array<i32>} : memref<1x1xf32, #tpu.memory_space<vmem>>, vector<1x1xf32>,
    } else {
    }
    %c0_i32_7 = arith.constant 0 : i32
    %15 = arith.cmpi sgt, %arg0, %c0_i32_7 : i32
    %16 = arith.extui %15 : i1 to i32
    %c0_i32_8 = arith.constant 0 : i32
    %17 = arith.cmpi ne, %16, %c0_i32_8 : i32
    scf.if %17 {
      %c0_18 = arith.constant 0 : index
      %c0_19 = arith.constant 0 : index
      %26 = vector.load %arg6[%c0_18, %c0_19] : memref<1x1xf32, #tpu.memory_space<vmem>>, vector<1x1xf32>
      %27 = arith.minimumf %26, %7 : vector<1x1xf32>
      %c0_20 = arith.constant 0 : index
      %c0_21 = arith.constant 0 : index
      %28 = vector.load %arg6[%c0_20, %c0_21] : memref<1x1xf32, #tpu.memory_space<vmem>>, vector<1x1xf32>
      tpu.vector_store %arg6[%c0_20, %c0_21], %27 {strides = array<i32>} : memref<1x1xf32, #tpu.memory_space<vmem>>, vector<1x1xf32>,
      %c0_22 = arith.constant 0 : index
      %c0_23 = arith.constant 0 : index
      %29 = vector.load %arg7[%c0_22, %c0_23] : memref<1x1xf32, #tpu.memory_space<vmem>>, vector<1x1xf32>
      %30 = arith.maximumf %29, %11 : vector<1x1xf32>
      %c0_24 = arith.constant 0 : index
      %c0_25 = arith.constant 0 : index
      %31 = vector.load %arg7[%c0_24, %c0_25] : memref<1x1xf32, #tpu.memory_space<vmem>>, vector<1x1xf32>
      tpu.vector_store %arg7[%c0_24, %c0_25], %30 {strides = array<i32>} : memref<1x1xf32, #tpu.memory_space<vmem>>, vector<1x1xf32>,
    } else {
    }
    %c0_9 = arith.constant 0 : index
    %c0_10 = arith.constant 0 : index
    %18 = vector.load %arg5[%c0_9, %c0_10] : memref<2x128xf32, #tpu.memory_space<vmem>>, vector<2x128xf32>
    %c0_11 = arith.constant 0 : index
    %c0_12 = arith.constant 0 : index
    %19 = vector.load %arg2[%c0_11, %c0_12] : memref<1024x128xf32, #tpu.memory_space<vmem>>, vector<1024x128xf32>
    %cst_13 = arith.constant dense<0.000000e+00> : vector<2x128xf32>
    %20 = tpu.matmul %0, %19, %cst_13 {dimension_numbers = #tpu.dot_dimension_numbers<[1], [0], [0], [1], [0, 0, 1, 1], [], []>} : vector<2x1024xf32>, vector<1024x128xf32>, vector<2x128xf32> -> vector<2x128xf32>
    %21 = arith.addf %18, %20 : vector<2x128xf32>
    %c0_14 = arith.constant 0 : index
    %c0_15 = arith.constant 0 : index
    %22 = vector.load %arg5[%c0_14, %c0_15] : memref<2x128xf32, #tpu.memory_space<vmem>>, vector<2x128xf32>
    tpu.vector_store %arg5[%c0_14, %c0_15], %21 {strides = array<i32>} : memref<2x128xf32, #tpu.memory_space<vmem>>, vector<2x128xf32>,
    %c0_i32_16 = arith.constant 0 : i32
    %23 = arith.cmpi eq, %arg0, %c0_i32_16 : i32
    %24 = arith.extui %23 : i1 to i32
    %c0_i32_17 = arith.constant 0 : i32
    %25 = arith.cmpi ne, %24, %c0_i32_17 : i32
    scf.if %25 {
      %26 = tpu.iota {dimensions = array<i32: 1>} : vector<1x128xi32>
      %27 = tpu.iota {dimensions = array<i32: 1>} : vector<2x128xi32>
      %c0_18 = arith.constant 0 : index
      %c0_19 = arith.constant 0 : index
      %28 = vector.load %arg6[%c0_18, %c0_19] : memref<1x1xf32, #tpu.memory_space<vmem>>, vector<1x1xf32>
      %c0_20 = arith.constant 0 : index
      %c0_21 = arith.constant 0 : index
      %29 = vector.load %arg7[%c0_20, %c0_21] : memref<1x1xf32, #tpu.memory_space<vmem>>, vector<1x1xf32>
      %30 = arith.subf %29, %28 : vector<1x1xf32>
      %cst_22 = arith.constant 1.000000e+00 : f32
      %31 = vector.broadcast %cst_22 : f32 to vector<1x1xf32>
      %32 = arith.divf %31, %30 : vector<1x1xf32>
      %c0_23 = arith.constant 0 : index
      %c0_24 = arith.constant 0 : index
      %33 = vector.load %arg5[%c0_23, %c0_24] : memref<2x128xf32, #tpu.memory_space<vmem>>, vector<2x128xf32>
      %c0_25 = arith.constant 0 : index
      %c0_26 = arith.constant 0 : index
      %34 = vector.load %arg3[%c0_25, %c0_26] : memref<1x128xf32, #tpu.memory_space<vmem>>, vector<1x128xf32>
      %35 = vector.broadcast %28 : vector<1x1xf32> to vector<1x128xf32>
      %36 = arith.mulf %35, %34 : vector<1x128xf32>
      %37 = vector.broadcast %36 : vector<1x128xf32> to vector<2x128xf32>
      %38 = arith.subf %33, %37 : vector<2x128xf32>
      %39 = vector.broadcast %32 : vector<1x1xf32> to vector<2x128xf32>
      %40 = arith.mulf %38, %39 : vector<2x128xf32>
      %41 = math.absf %40 : vector<2x128xf32>
      %cst_27 = arith.constant 0.000000e+00 : f32
      %42 = vector.broadcast %cst_27 : f32 to vector<1x128xf32>
      %43 = vector.extract_strided_slice %41 {offsets = [0, 0], sizes = [1, 128], strides = [1, 1]} : vector<2x128xf32> to vector<1x128xf32>
      %cst_28 = arith.constant 1.000000e+00 : f32
      %44 = vector.broadcast %cst_28 : f32 to vector<1x128xf32>
      %45 = arith.subf %44, %42 : vector<1x128xf32>
      %46 = arith.mulf %43, %45 : vector<1x128xf32>
      %cst_29 = arith.constant 0.000000e+00 : f32
      %47 = vector.broadcast %cst_29 : f32 to vector<1x128xf32>
      %cst_30 = arith.constant dense<0xFF800000> : vector<1xf32>
      %48 = vector.multi_reduction <maximumf>, %46, %cst_30 [1] : vector<1x128xf32> to vector<1xf32>
      %49 = vector.shape_cast %48 : vector<1xf32> to vector<1x1xf32>
      %50 = vector.broadcast %49 : vector<1x1xf32> to vector<1x128xf32>
      %51 = arith.cmpf oeq, %46, %50 : vector<1x128xf32>
      %c128_i32 = arith.constant 128 : i32
      %52 = vector.broadcast %c128_i32 : i32 to vector<1x128xi32>
      %53 = arith.select %51, %26, %52 : vector<1x128xi1>, vector<1x128xi32>
      %cst_31 = arith.constant dense<2147483647> : vector<1xi32>
      %54 = vector.multi_reduction <minsi>, %53, %cst_31 [1] : vector<1x128xi32> to vector<1xi32>
      %55 = vector.shape_cast %54 : vector<1xi32> to vector<1x1xi32>
      %56 = vector.broadcast %55 : vector<1x1xi32> to vector<1x128xi32>
      %57 = arith.cmpi eq, %26, %56 : vector<1x128xi32>
      %58 = arith.extui %57 : vector<1x128xi1> to vector<1x128xi32>
      %59 = arith.sitofp %58 : vector<1x128xi32> to vector<1x128xf32>
      %60 = arith.addf %47, %59 : vector<1x128xf32>
      %cst_32 = arith.constant 0xFF800000 : f32
      %61 = vector.broadcast %cst_32 : f32 to vector<1x128xf32>
      %62 = arith.select %57, %61, %46 : vector<1x128xi1>, vector<1x128xf32>
      %cst_33 = arith.constant dense<0xFF800000> : vector<1xf32>
      %63 = vector.multi_reduction <maximumf>, %62, %cst_33 [1] : vector<1x128xf32> to vector<1xf32>
      %64 = vector.shape_cast %63 : vector<1xf32> to vector<1x1xf32>
      %65 = vector.broadcast %64 : vector<1x1xf32> to vector<1x128xf32>
      %66 = arith.cmpf oeq, %62, %65 : vector<1x128xf32>
      %c128_i32_34 = arith.constant 128 : i32
      %67 = vector.broadcast %c128_i32_34 : i32 to vector<1x128xi32>
      %68 = arith.select %66, %26, %67 : vector<1x128xi1>, vector<1x128xi32>
      %cst_35 = arith.constant dense<2147483647> : vector<1xi32>
      %69 = vector.multi_reduction <minsi>, %68, %cst_35 [1] : vector<1x128xi32> to vector<1xi32>
      %70 = vector.shape_cast %69 : vector<1xi32> to vector<1x1xi32>
      %71 = vector.broadcast %70 : vector<1x1xi32> to vector<1x128xi32>
      %72 = arith.cmpi eq, %26, %71 : vector<1x128xi32>
      %73 = arith.extui %72 : vector<1x128xi1> to vector<1x128xi32>
      %74 = arith.sitofp %73 : vector<1x128xi32> to vector<1x128xf32>
      %75 = arith.addf %60, %74 : vector<1x128xf32>
      %cst_36 = arith.constant 0xFF800000 : f32
      %76 = vector.broadcast %cst_36 : f32 to vector<1x128xf32>
      %77 = arith.select %72, %76, %62 : vector<1x128xi1>, vector<1x128xf32>
      %cst_37 = arith.constant dense<0xFF800000> : vector<1xf32>
      %78 = vector.multi_reduction <maximumf>, %77, %cst_37 [1] : vector<1x128xf32> to vector<1xf32>
      %79 = vector.shape_cast %78 : vector<1xf32> to vector<1x1xf32>
      %80 = vector.broadcast %79 : vector<1x1xf32> to vector<1x128xf32>
      %81 = arith.cmpf oeq, %77, %80 : vector<1x128xf32>
      %c128_i32_38 = arith.constant 128 : i32
      %82 = vector.broadcast %c128_i32_38 : i32 to vector<1x128xi32>
      %83 = arith.select %81, %26, %82 : vector<1x128xi1>, vector<1x128xi32>
      %cst_39 = arith.constant dense<2147483647> : vector<1xi32>
      %84 = vector.multi_reduction <minsi>, %83, %cst_39 [1] : vector<1x128xi32> to vector<1xi32>
      %85 = vector.shape_cast %84 : vector<1xi32> to vector<1x1xi32>
      %86 = vector.broadcast %85 : vector<1x1xi32> to vector<1x128xi32>
      %87 = arith.cmpi eq, %26, %86 : vector<1x128xi32>
      %88 = arith.extui %87 : vector<1x128xi1> to vector<1x128xi32>
      %89 = arith.sitofp %88 : vector<1x128xi32> to vector<1x128xf32>
      %90 = arith.addf %75, %89 : vector<1x128xf32>
      %cst_40 = arith.constant 0xFF800000 : f32
      %91 = vector.broadcast %cst_40 : f32 to vector<1x128xf32>
      %92 = arith.select %87, %91, %77 : vector<1x128xi1>, vector<1x128xf32>
      %cst_41 = arith.constant dense<0xFF800000> : vector<1xf32>
      %93 = vector.multi_reduction <maximumf>, %92, %cst_41 [1] : vector<1x128xf32> to vector<1xf32>
      %94 = vector.shape_cast %93 : vector<1xf32> to vector<1x1xf32>
      %95 = vector.broadcast %94 : vector<1x1xf32> to vector<1x128xf32>
      %96 = arith.cmpf oeq, %92, %95 : vector<1x128xf32>
      %c128_i32_42 = arith.constant 128 : i32
      %97 = vector.broadcast %c128_i32_42 : i32 to vector<1x128xi32>
      %98 = arith.select %96, %26, %97 : vector<1x128xi1>, vector<1x128xi32>
      %cst_43 = arith.constant dense<2147483647> : vector<1xi32>
      %99 = vector.multi_reduction <minsi>, %98, %cst_43 [1] : vector<1x128xi32> to vector<1xi32>
      %100 = vector.shape_cast %99 : vector<1xi32> to vector<1x1xi32>
      %101 = vector.broadcast %100 : vector<1x1xi32> to vector<1x128xi32>
      %102 = arith.cmpi eq, %26, %101 : vector<1x128xi32>
      %103 = arith.extui %102 : vector<1x128xi1> to vector<1x128xi32>
      %104 = arith.sitofp %103 : vector<1x128xi32> to vector<1x128xf32>
      %105 = arith.addf %90, %104 : vector<1x128xf32>
      %106 = vector.extract_strided_slice %40 {offsets = [0, 0], sizes = [1, 128], strides = [1, 1]} : vector<2x128xf32> to vector<1x128xf32>
      %107 = arith.mulf %106, %105 : vector<1x128xf32>
      %c0_44 = arith.constant 0 : index
      %c0_45 = arith.constant 0 : index
      %108 = vector.load %arg4[%c0_44, %c0_45] : memref<2x128xf32, #tpu.memory_space<vmem>>, vector<1x128xf32>
      tpu.vector_store %arg4[%c0_44, %c0_45], %107 {strides = array<i32>} : memref<2x128xf32, #tpu.memory_space<vmem>>, vector<1x128xf32>,
      %cst_46 = arith.constant 5.000000e-01 : f32
      %109 = vector.broadcast %cst_46 : f32 to vector<1x128xf32>
      %110 = arith.mulf %42, %109 : vector<1x128xf32>
      %111 = arith.addf %110, %105 : vector<1x128xf32>
      %112 = vector.extract_strided_slice %41 {offsets = [1, 0], sizes = [1, 128], strides = [1, 1]} : vector<2x128xf32> to vector<1x128xf32>
      %cst_47 = arith.constant 1.000000e+00 : f32
      %113 = vector.broadcast %cst_47 : f32 to vector<1x128xf32>
      %114 = arith.subf %113, %111 : vector<1x128xf32>
      %115 = arith.mulf %112, %114 : vector<1x128xf32>
      %cst_48 = arith.constant 0.000000e+00 : f32
      %116 = vector.broadcast %cst_48 : f32 to vector<1x128xf32>
      %cst_49 = arith.constant dense<0xFF800000> : vector<1xf32>
      %117 = vector.multi_reduction <maximumf>, %115, %cst_49 [1] : vector<1x128xf32> to vector<1xf32>
      %118 = vector.shape_cast %117 : vector<1xf32> to vector<1x1xf32>
      %119 = vector.broadcast %118 : vector<1x1xf32> to vector<1x128xf32>
      %120 = arith.cmpf oeq, %115, %119 : vector<1x128xf32>
      %c128_i32_50 = arith.constant 128 : i32
      %121 = vector.broadcast %c128_i32_50 : i32 to vector<1x128xi32>
      %122 = arith.select %120, %26, %121 : vector<1x128xi1>, vector<1x128xi32>
      %cst_51 = arith.constant dense<2147483647> : vector<1xi32>
      %123 = vector.multi_reduction <minsi>, %122, %cst_51 [1] : vector<1x128xi32> to vector<1xi32>
      %124 = vector.shape_cast %123 : vector<1xi32> to vector<1x1xi32>
      %125 = vector.broadcast %124 : vector<1x1xi32> to vector<1x128xi32>
      %126 = arith.cmpi eq, %26, %125 : vector<1x128xi32>
      %127 = arith.extui %126 : vector<1x128xi1> to vector<1x128xi32>
      %128 = arith.sitofp %127 : vector<1x128xi32> to vector<1x128xf32>
      %129 = arith.addf %116, %128 : vector<1x128xf32>
      %cst_52 = arith.constant 0xFF800000 : f32
      %130 = vector.broadcast %cst_52 : f32 to vector<1x128xf32>
      %131 = arith.select %126, %130, %115 : vector<1x128xi1>, vector<1x128xf32>
      %cst_53 = arith.constant dense<0xFF800000> : vector<1xf32>
      %132 = vector.multi_reduction <maximumf>, %131, %cst_53 [1] : vector<1x128xf32> to vector<1xf32>
      %133 = vector.shape_cast %132 : vector<1xf32> to vector<1x1xf32>
      %134 = vector.broadcast %133 : vector<1x1xf32> to vector<1x128xf32>
      %135 = arith.cmpf oeq, %131, %134 : vector<1x128xf32>
      %c128_i32_54 = arith.constant 128 : i32
      %136 = vector.broadcast %c128_i32_54 : i32 to vector<1x128xi32>
      %137 = arith.select %135, %26, %136 : vector<1x128xi1>, vector<1x128xi32>
      %cst_55 = arith.constant dense<2147483647> : vector<1xi32>
      %138 = vector.multi_reduction <minsi>, %137, %cst_55 [1] : vector<1x128xi32> to vector<1xi32>
      %139 = vector.shape_cast %138 : vector<1xi32> to vector<1x1xi32>
      %140 = vector.broadcast %139 : vector<1x1xi32> to vector<1x128xi32>
      %141 = arith.cmpi eq, %26, %140 : vector<1x128xi32>
      %142 = arith.extui %141 : vector<1x128xi1> to vector<1x128xi32>
      %143 = arith.sitofp %142 : vector<1x128xi32> to vector<1x128xf32>
      %144 = arith.addf %129, %143 : vector<1x128xf32>
      %cst_56 = arith.constant 0xFF800000 : f32
      %145 = vector.broadcast %cst_56 : f32 to vector<1x128xf32>
      %146 = arith.select %141, %145, %131 : vector<1x128xi1>, vector<1x128xf32>
      %cst_57 = arith.constant dense<0xFF800000> : vector<1xf32>
      %147 = vector.multi_reduction <maximumf>, %146, %cst_57 [1] : vector<1x128xf32> to vector<1xf32>
      %148 = vector.shape_cast %147 : vector<1xf32> to vector<1x1xf32>
      %149 = vector.broadcast %148 : vector<1x1xf32> to vector<1x128xf32>
      %150 = arith.cmpf oeq, %146, %149 : vector<1x128xf32>
      %c128_i32_58 = arith.constant 128 : i32
      %151 = vector.broadcast %c128_i32_58 : i32 to vector<1x128xi32>
      %152 = arith.select %150, %26, %151 : vector<1x128xi1>, vector<1x128xi32>
      %cst_59 = arith.constant dense<2147483647> : vector<1xi32>
      %153 = vector.multi_reduction <minsi>, %152, %cst_59 [1] : vector<1x128xi32> to vector<1xi32>
      %154 = vector.shape_cast %153 : vector<1xi32> to vector<1x1xi32>
      %155 = vector.broadcast %154 : vector<1x1xi32> to vector<1x128xi32>
      %156 = arith.cmpi eq, %26, %155 : vector<1x128xi32>
      %157 = arith.extui %156 : vector<1x128xi1> to vector<1x128xi32>
      %158 = arith.sitofp %157 : vector<1x128xi32> to vector<1x128xf32>
      %159 = arith.addf %144, %158 : vector<1x128xf32>
      %cst_60 = arith.constant 0xFF800000 : f32
      %160 = vector.broadcast %cst_60 : f32 to vector<1x128xf32>
      %161 = arith.select %156, %160, %146 : vector<1x128xi1>, vector<1x128xf32>
      %cst_61 = arith.constant dense<0xFF800000> : vector<1xf32>
      %162 = vector.multi_reduction <maximumf>, %161, %cst_61 [1] : vector<1x128xf32> to vector<1xf32>
      %163 = vector.shape_cast %162 : vector<1xf32> to vector<1x1xf32>
      %164 = vector.broadcast %163 : vector<1x1xf32> to vector<1x128xf32>
      %165 = arith.cmpf oeq, %161, %164 : vector<1x128xf32>
      %c128_i32_62 = arith.constant 128 : i32
      %166 = vector.broadcast %c128_i32_62 : i32 to vector<1x128xi32>
      %167 = arith.select %165, %26, %166 : vector<1x128xi1>, vector<1x128xi32>
      %cst_63 = arith.constant dense<2147483647> : vector<1xi32>
      %168 = vector.multi_reduction <minsi>, %167, %cst_63 [1] : vector<1x128xi32> to vector<1xi32>
      %169 = vector.shape_cast %168 : vector<1xi32> to vector<1x1xi32>
      %170 = vector.broadcast %169 : vector<1x1xi32> to vector<1x128xi32>
      %171 = arith.cmpi eq, %26, %170 : vector<1x128xi32>
      %172 = arith.extui %171 : vector<1x128xi1> to vector<1x128xi32>
      %173 = arith.sitofp %172 : vector<1x128xi32> to vector<1x128xf32>
      %174 = arith.addf %159, %173 : vector<1x128xf32>
      %175 = vector.extract_strided_slice %40 {offsets = [1, 0], sizes = [1, 128], strides = [1, 1]} : vector<2x128xf32> to vector<1x128xf32>
      %176 = arith.mulf %175, %174 : vector<1x128xf32>
      %c1 = arith.constant 1 : index
      %c0_64 = arith.constant 0 : index
      %177 = vector.load %arg4[%c1, %c0_64] : memref<2x128xf32, #tpu.memory_space<vmem>>, vector<1x128xf32>
      tpu.vector_store %arg4[%c1, %c0_64], %176 {strides = array<i32>} : memref<2x128xf32, #tpu.memory_space<vmem>>, vector<1x128xf32>,
      %c0_65 = arith.constant 0 : index
      %c0_66 = arith.constant 0 : index
      %178 = vector.load %arg4[%c0_65, %c0_66] : memref<2x128xf32, #tpu.memory_space<vmem>>, vector<2x128xf32>
      %cst_67 = arith.constant 0.000000e+00 : f32
      %179 = vector.broadcast %cst_67 : f32 to vector<2x128xf32>
      %cst_68 = arith.constant dense<0xFF800000> : vector<2xf32>
      %180 = vector.multi_reduction <maximumf>, %178, %cst_68 [1] : vector<2x128xf32> to vector<2xf32>
      %181 = vector.shape_cast %180 : vector<2xf32> to vector<2x1xf32>
      %182 = vector.broadcast %181 : vector<2x1xf32> to vector<2x128xf32>
      %183 = arith.cmpf oeq, %178, %182 : vector<2x128xf32>
      %c128_i32_69 = arith.constant 128 : i32
      %184 = vector.broadcast %c128_i32_69 : i32 to vector<2x128xi32>
      %185 = arith.select %183, %27, %184 : vector<2x128xi1>, vector<2x128xi32>
      %cst_70 = arith.constant dense<2147483647> : vector<2xi32>
      %186 = vector.multi_reduction <minsi>, %185, %cst_70 [1] : vector<2x128xi32> to vector<2xi32>
      %187 = vector.shape_cast %186 : vector<2xi32> to vector<2x1xi32>
      %188 = vector.broadcast %187 : vector<2x1xi32> to vector<2x128xi32>
      %189 = arith.cmpi eq, %27, %188 : vector<2x128xi32>
      %190 = arith.extui %189 : vector<2x128xi1> to vector<2x128xi32>
      %191 = arith.sitofp %190 : vector<2x128xi32> to vector<2x128xf32>
      %192 = arith.addf %179, %191 : vector<2x128xf32>
      %cst_71 = arith.constant 0xFF800000 : f32
      %193 = vector.broadcast %cst_71 : f32 to vector<2x128xf32>
      %194 = arith.select %189, %193, %178 : vector<2x128xi1>, vector<2x128xf32>
      %cst_72 = arith.constant dense<0xFF800000> : vector<2xf32>
      %195 = vector.multi_reduction <maximumf>, %194, %cst_72 [1] : vector<2x128xf32> to vector<2xf32>
      %196 = vector.shape_cast %195 : vector<2xf32> to vector<2x1xf32>
      %197 = vector.broadcast %196 : vector<2x1xf32> to vector<2x128xf32>
      %198 = arith.cmpf oeq, %194, %197 : vector<2x128xf32>
      %c128_i32_73 = arith.constant 128 : i32
      %199 = vector.broadcast %c128_i32_73 : i32 to vector<2x128xi32>
      %200 = arith.select %198, %27, %199 : vector<2x128xi1>, vector<2x128xi32>
      %cst_74 = arith.constant dense<2147483647> : vector<2xi32>
      %201 = vector.multi_reduction <minsi>, %200, %cst_74 [1] : vector<2x128xi32> to vector<2xi32>
      %202 = vector.shape_cast %201 : vector<2xi32> to vector<2x1xi32>
      %203 = vector.broadcast %202 : vector<2x1xi32> to vector<2x128xi32>
      %204 = arith.cmpi eq, %27, %203 : vector<2x128xi32>
      %205 = arith.extui %204 : vector<2x128xi1> to vector<2x128xi32>
      %206 = arith.sitofp %205 : vector<2x128xi32> to vector<2x128xf32>
      %207 = arith.addf %192, %206 : vector<2x128xf32>
      %cst_75 = arith.constant 0xFF800000 : f32
      %208 = vector.broadcast %cst_75 : f32 to vector<2x128xf32>
      %209 = arith.select %204, %208, %194 : vector<2x128xi1>, vector<2x128xf32>
      %cst_76 = arith.constant dense<0xFF800000> : vector<2xf32>
      %210 = vector.multi_reduction <maximumf>, %209, %cst_76 [1] : vector<2x128xf32> to vector<2xf32>
      %211 = vector.shape_cast %210 : vector<2xf32> to vector<2x1xf32>
      %212 = vector.broadcast %211 : vector<2x1xf32> to vector<2x128xf32>
      %213 = arith.cmpf oeq, %209, %212 : vector<2x128xf32>
      %c128_i32_77 = arith.constant 128 : i32
      %214 = vector.broadcast %c128_i32_77 : i32 to vector<2x128xi32>
      %215 = arith.select %213, %27, %214 : vector<2x128xi1>, vector<2x128xi32>
      %cst_78 = arith.constant dense<2147483647> : vector<2xi32>
      %216 = vector.multi_reduction <minsi>, %215, %cst_78 [1] : vector<2x128xi32> to vector<2xi32>
      %217 = vector.shape_cast %216 : vector<2xi32> to vector<2x1xi32>
      %218 = vector.broadcast %217 : vector<2x1xi32> to vector<2x128xi32>
      %219 = arith.cmpi eq, %27, %218 : vector<2x128xi32>
      %220 = arith.extui %219 : vector<2x128xi1> to vector<2x128xi32>
      %221 = arith.sitofp %220 : vector<2x128xi32> to vector<2x128xf32>
      %222 = arith.addf %207, %221 : vector<2x128xf32>
      %cst_79 = arith.constant 0xFF800000 : f32
      %223 = vector.broadcast %cst_79 : f32 to vector<2x128xf32>
      %224 = arith.select %219, %223, %209 : vector<2x128xi1>, vector<2x128xf32>
      %cst_80 = arith.constant dense<0xFF800000> : vector<2xf32>
      %225 = vector.multi_reduction <maximumf>, %224, %cst_80 [1] : vector<2x128xf32> to vector<2xf32>
      %226 = vector.shape_cast %225 : vector<2xf32> to vector<2x1xf32>
      %227 = vector.broadcast %226 : vector<2x1xf32> to vector<2x128xf32>
      %228 = arith.cmpf oeq, %224, %227 : vector<2x128xf32>
      %c128_i32_81 = arith.constant 128 : i32
      %229 = vector.broadcast %c128_i32_81 : i32 to vector<2x128xi32>
      %230 = arith.select %228, %27, %229 : vector<2x128xi1>, vector<2x128xi32>
      %cst_82 = arith.constant dense<2147483647> : vector<2xi32>
      %231 = vector.multi_reduction <minsi>, %230, %cst_82 [1] : vector<2x128xi32> to vector<2xi32>
      %232 = vector.shape_cast %231 : vector<2xi32> to vector<2x1xi32>
      %233 = vector.broadcast %232 : vector<2x1xi32> to vector<2x128xi32>
      %234 = arith.cmpi eq, %27, %233 : vector<2x128xi32>
      %235 = arith.extui %234 : vector<2x128xi1> to vector<2x128xi32>
      %236 = arith.sitofp %235 : vector<2x128xi32> to vector<2x128xf32>
      %237 = arith.addf %222, %236 : vector<2x128xf32>
      %c0_83 = arith.constant 0 : index
      %c0_84 = arith.constant 0 : index
      %238 = vector.load %arg4[%c0_83, %c0_84] : memref<2x128xf32, #tpu.memory_space<vmem>>, vector<2x128xf32>
      tpu.vector_store %arg4[%c0_83, %c0_84], %237 {strides = array<i32>} : memref<2x128xf32, #tpu.memory_space<vmem>>, vector<2x128xf32>,
    } else {
    }
    return
  }
  func.func @transform_0(%arg0: i32) -> (i32, i32) {
    %c0_i32 = arith.constant 0 : i32
    %c0_i32_0 = arith.constant 0 : i32
    return %c0_i32, %arg0 : i32, i32
  }
  func.func @transform_1(%arg0: i32) -> (i32, i32) {
    %c0_i32 = arith.constant 0 : i32
    %c0_i32_0 = arith.constant 0 : i32
    return %arg0, %c0_i32 : i32, i32
  }
  func.func @transform_2(%arg0: i32) -> (i32, i32) {
    %c0_i32 = arith.constant 0 : i32
    %c0_i32_0 = arith.constant 0 : i32
    %c0_i32_1 = arith.constant 0 : i32
    return %c0_i32, %c0_i32_0 : i32, i32
  }
  func.func @transform_3(%arg0: i32) -> (i32, i32) {
    %c0_i32 = arith.constant 0 : i32
    %c0_i32_0 = arith.constant 0 : i32
    %c0_i32_1 = arith.constant 0 : i32
    return %c0_i32, %c0_i32_0 : i32, i32
  }
}

</mosaic_0001>

<llo_original>
// kernel: _lambda_.1
$region0: #{_lambda_.1}
  #allocation0 [shape = 'u32[]', space=smem, size = 0x4, offset = 0x4, fixed_abs, tag = 'smem constant byte address 0x4 - core index']
  #allocation1 [shape = 'u32[144,128]{1,0:T(1,128)}', space=vmem, size = 0x12000, scoped, tag = 'internal scratch']
  #allocation2 [shape = 'f32[2,128]{1,0:T(2,128)}', space=vmem, size = 0x400, scoped, tag = 'scratch operand']
  #allocation3 [shape = 'f32[1,1]{1,0:T(1,128)}', space=vmem, size = 0x200, scoped, tag = 'scratch operand']
  #allocation4 [shape = 'f32[1,1]{1,0:T(1,128)}', space=vmem, size = 0x200, scoped, tag = 'scratch operand']
  %s0 = inlined_call_operand.vmem [shape: f32[2,1024], index: 0, kind: input, shape index: {}]
  %s1 = inlined_call_operand.hbm [shape: f32[1024,128], index: 1, kind: input, shape index: {}]
  %s2 = inlined_call_operand.vmem [shape: f32[1,128], index: 2, kind: input, shape index: {}]
  %s3 = inlined_call_operand.hbm [shape: f32[2,128], index: 3, kind: output, shape index: {}]
  %s4 = sld [smem:[#allocation0]]
  $region42: #{_lambda_.1} parent=0
    _
  %s6 = ssub.s32 1, %s4
  %s7 = scalar_select 0, %s6, %s4
  $region1: #{_lambda_.1} parent=0
    #allocation5 [shape = 'u8[524288]{0}', space=vmem, size = 0x80000, scoped, tag = 'input window, operand 1, single buffered']
    #allocation6 [shape = 's32[1]{0}', space=sflag, size = 0x4, scoped, tag = 'scoped memory for _lambda_.1']
    #allocation7 [shape = 's32[1]{0}', space=sflag, size = 0x4, scoped, tag = 'scoped memory for _lambda_.1']
    #allocation8 [shape = 'u8[1024]{0}', space=vmem, size = 0x400, scoped, tag = 'output window, operand 0, single buffered']
    %8 = vsyncpa [#allocation6], 0
    %9 = vsyncpa [#allocation7], 0
    // Predicated region
    $region2: #{_lambda_.1} parent=1 // pred_check
      _
    $region3: #{_lambda_.1} parent=1 // pred_check_branch
      %11 = sbr.rel (0) target = $region5
    $region4: #{_lambda_.1} parent=1 // pred_region
      _
    $region5: #{_lambda_.1} parent=1 // pred_fallthru
      _
    // Predicated region
    $region6: #{_lambda_.1} parent=1 // pred_check
      _
    $region7: #{_lambda_.1} parent=1 // pred_check_branch
      %13 = sbr.rel (0) target = $region9
    $region8: #{_lambda_.1} parent=1 // pred_region
      %s15 = ssub.s32 16384, 16384
      %16 = vsyncadd [#allocation6], %s15
      %s17 = sshll.u32 [#allocation5], 4
      %s18 = int_to_ptr.vmem [resolvable:$true] %s17
      %23 = dma.hbm_to_vmem [thread:$0]  %s1, 16384, %s18, [#allocation6], 128, 128, 8
    $region9: #{_lambda_.1} parent=1 // pred_fallthru
      _
    // Predicated region
    $region10: #{_lambda_.1} parent=1 // pred_check
      _
    $region11: #{_lambda_.1} parent=1 // pred_check_branch
      %25 = sbr.rel (0) target = $region13
    $region12: #{_lambda_.1} parent=1 // pred_region
      _
    $region13: #{_lambda_.1} parent=1 // pred_fallthru
      _
    // Predicated region
    $region14: #{_lambda_.1} parent=1 // pred_check
      _
    $region15: #{_lambda_.1} parent=1 // pred_check_branch
      %27 = sbr.rel (0) target = $region17
    $region16: #{_lambda_.1} parent=1 // pred_region
      %28 = dma.done [#allocation6], 16384
    $region17: #{_lambda_.1} parent=1 // pred_fallthru
      _
    %v29 = vld [vmem:[%s0] sm:$0xff]
    %v30 = vld [vmem:[%s0 + $0x8] sm:$0xff]
    %p31 = scmp.eq.s32.totalorder 0, 0
    // Predicated region
    $region18: #{_lambda_.1} parent=1 // pred_check
      %p32 = pneg %p31
    $region19: #{_lambda_.1} parent=1 // pred_check_branch
      %34 = sbr.rel (%p32) target = $region21
    $region20: #{_lambda_.1} parent=1 // pred_region
      %35 = vst [vmem:[#allocation2] sm:$0x3] 0.0
    $region21: #{_lambda_.1} parent=1 // pred_fallthru
      _
    %v38 = vcombine.high %v29, %v29
    %v40 = vunpack.c.l.s4 1983009808
    %v41 = vunpack.c.0.s8 %v40
    %v42 = vlaneseq
    %v43 = vshrl.u32 %v42, 7
    %v44 = vsub.s32 %v41, %v43
    %v45 = vrot.slane %v29, %v44
    %v47 = vunpack.c.l.s4 1983009808
    %v48 = vunpack.c.0.s8 %v47
    %v49 = vlaneseq
    %v50 = vshrl.u32 %v49, 7
    %v51 = vsub.s32 %v48, %v50
    %v52 = vrot.slane %v38, %v51
    %v53 = vcombine.high %v45, %v45
    %v54 = vcombine.high %v52, %v52
    %v55 = vcombine.high %v30, %v30
    %v57 = vunpack.c.l.s4 1983009808
    %v58 = vunpack.c.0.s8 %v57
    %v59 = vlaneseq
    %v60 = vshrl.u32 %v59, 7
    %v61 = vsub.s32 %v58, %v60
    %v62 = vrot.slane %v30, %v61
    %v64 = vunpack.c.l.s4 1983009808
    %v65 = vunpack.c.0.s8 %v64
    %v66 = vlaneseq
    %v67 = vshrl.u32 %v66, 7
    %v68 = vsub.s32 %v65, %v67
    %v69 = vrot.slane %v55, %v68
    %v70 = vcombine.high %v62, %v62
    %v71 = vcombine.high %v69, %v69
    %vm80 = vcmask 1041408
    %v81 = vsel %vm80, %v45, inf
    %v82 = vsel %vm80, %v53, inf
    %v83 = vsel %vm80, %v52, inf
    %v84 = vsel %vm80, %v54, inf
    %v85 = vsel %vm80, %v62, inf
    %v86 = vmin.f32 %v81, %v85
    %v87 = vsel %vm80, %v70, inf
    %v88 = vmin.f32 %v82, %v87
    %v89 = vsel %vm80, %v69, inf
    %v90 = vmin.f32 %v83, %v89
    %v91 = vsel %vm80, %v71, inf
    %v92 = vmin.f32 %v84, %v91
    %v93 = vmin.f32 %v86, %v88
    %v94 = vmin.f32 %v90, %v92
    %v95 = vmin.f32 %v93, %v94
    %96 = vmin.xlane.f32.xlu0 %v95
    %v97 = vpop.xlane.xlu0 %96
    %v98 = vsel %vm80, %v97, inf
    %v99 = vrot.slane %v98, 4
    %v100 = vmin.f32 %v98, %v99
    %v101 = vrot.slane %v100, 2
    %v102 = vmin.f32 %v100, %v101
    %v103 = vrot.slane %v102, 1
    %v104 = vmin.f32 %v102, %v103
    %v105 = vsel %vm80, %v45, -inf
    %v106 = vsel %vm80, %v53, -inf
    %v107 = vsel %vm80, %v52, -inf
    %v108 = vsel %vm80, %v54, -inf
    %v109 = vsel %vm80, %v62, -inf
    %v110 = vmax.f32 %v105, %v109
    %v111 = vsel %vm80, %v70, -inf
    %v112 = vmax.f32 %v106, %v111
    %v113 = vsel %vm80, %v69, -inf
    %v114 = vmax.f32 %v107, %v113
    %v115 = vsel %vm80, %v71, -inf
    %v116 = vmax.f32 %v108, %v115
    %v117 = vmax.f32 %v110, %v112
    %v118 = vmax.f32 %v114, %v116
    %v119 = vmax.f32 %v117, %v118
    %120 = vmax.xlane.f32.xlu0 %v119
    %v121 = vpop.xlane.xlu0 %120
    %v122 = vsel %vm80, %v121, -inf
    %v123 = vrot.slane %v122, 4
    %v124 = vmax.f32 %v122, %v123
    %v125 = vrot.slane %v124, 2
    %v126 = vmax.f32 %v124, %v125
    %v127 = vrot.slane %v126, 1
    %v128 = vmax.f32 %v126, %v127
    // Predicated region
    $region22: #{_lambda_.1} parent=1 // pred_check
      %p129 = pneg %p31
    $region23: #{_lambda_.1} parent=1 // pred_check_branch
      %131 = sbr.rel (%p129) target = $region25
    $region24: #{_lambda_.1} parent=1 // pred_region
      %vm132 = vcmask 0
      %133 = vst.msk [vmem:[#allocation3] sm:$0x1] %vm132, %v104
      %134 = vst.msk [vmem:[#allocation4] sm:$0x1] %vm132, %v128
    $region25: #{_lambda_.1} parent=1 // pred_fallthru
      _
    %p135 = scmp.gt.s32.totalorder 0, 0
    // Predicated region
    $region26: #{_lambda_.1} parent=1 // pred_check
      %p136 = pneg %p135
    $region27: #{_lambda_.1} parent=1 // pred_check_branch
      %138 = sbr.rel (%p136) target = $region29
    $region28: #{_lambda_.1} parent=1 // pred_region
      %v139 = vld [vmem:[#allocation3] sm:$0x1]
      %v140 = vmin.f32 %v139, %v104
      %vm141 = vcmask 0
      %142 = vst.msk [vmem:[#allocation3] sm:$0x1] %vm141, %v140
      %v143 = vld [vmem:[#allocation4] sm:$0x1]
      %v144 = vmax.f32 %v143, %v128
      %145 = vst.msk [vmem:[#allocation4] sm:$0x1] %vm141, %v144
    $region29: #{_lambda_.1} parent=1 // pred_fallthru
      _
    %v146 = vld [vmem:[#allocation2] sm:$0x3]
    %v147 = vld [vmem:[#allocation5] sm:$0xff]
    %v148 = vld [vmem:[#allocation5 + $0x8] sm:$0xff]
    %v149 = vld [vmem:[#allocation5 + $0x10] sm:$0xff]
    %v150 = vld [vmem:[#allocation5 + $0x18] sm:$0xff]
    %v151 = vld [vmem:[#allocation5 + $0x20] sm:$0xff]
    %v152 = vld [vmem:[#allocation5 + $0x28] sm:$0xff]
    %v153 = vld [vmem:[#allocation5 + $0x30] sm:$0xff]
    %v154 = vld [vmem:[#allocation5 + $0x38] sm:$0xff]
    %v155 = vld [vmem:[#allocation5 + $0x40] sm:$0xff]
    %v156 = vld [vmem:[#allocation5 + $0x48] sm:$0xff]
    %v157 = vld [vmem:[#allocation5 + $0x50] sm:$0xff]
    %v158 = vld [vmem:[#allocation5 + $0x58] sm:$0xff]
    %v159 = vld [vmem:[#allocation5 + $0x60] sm:$0xff]
    %v160 = vld [vmem:[#allocation5 + $0x68] sm:$0xff]
    %v161 = vld [vmem:[#allocation5 + $0x70] sm:$0xff]
    %v162 = vld [vmem:[#allocation5 + $0x78] sm:$0xff]
    %v163 = vld [vmem:[#allocation5 + $0x80] sm:$0xff]
    %v164 = vld [vmem:[#allocation5 + $0x88] sm:$0xff]
    %v165 = vld [vmem:[#allocation5 + $0x90] sm:$0xff]
    %v166 = vld [vmem:[#allocation5 + $0x98] sm:$0xff]
    %v167 = vld [vmem:[#allocation5 + $0xa0] sm:$0xff]
    %v168 = vld [vmem:[#allocation5 + $0xa8] sm:$0xff]
    %v169 = vld [vmem:[#allocation5 + $0xb0] sm:$0xff]
    %v170 = vld [vmem:[#allocation5 + $0xb8] sm:$0xff]
    %v171 = vld [vmem:[#allocation5 + $0xc0] sm:$0xff]
    %v172 = vld [vmem:[#allocation5 + $0xc8] sm:$0xff]
    %v173 = vld [vmem:[#allocation5 + $0xd0] sm:$0xff]
    %v174 = vld [vmem:[#allocation5 + $0xd8] sm:$0xff]
    %v175 = vld [vmem:[#allocation5 + $0xe0] sm:$0xff]
    %v176 = vld [vmem:[#allocation5 + $0xe8] sm:$0xff]
    %v177 = vld [vmem:[#allocation5 + $0xf0] sm:$0xff]
    %v178 = vld [vmem:[#allocation5 + $0xf8] sm:$0xff]
    %v179 = vld [vmem:[#allocation5 + $0x100] sm:$0xff]
    %v180 = vld [vmem:[#allocation5 + $0x108] sm:$0xff]
    %v181 = vld [vmem:[#allocation5 + $0x110] sm:$0xff]
    %v182 = vld [vmem:[#allocation5 + $0x118] sm:$0xff]
    %v183 = vld [vmem:[#allocation5 + $0x120] sm:$0xff]
    %v184 = vld [vmem:[#allocation5 + $0x128] sm:$0xff]
    %v185 = vld [vmem:[#allocation5 + $0x130] sm:$0xff]
    %v186 = vld [vmem:[#allocation5 + $0x138] sm:$0xff]
    %v187 = vld [vmem:[#allocation5 + $0x140] sm:$0xff]
    %v188 = vld [vmem:[#allocation5 + $0x148] sm:$0xff]
    %v189 = vld [vmem:[#allocation5 + $0x150] sm:$0xff]
    %v190 = vld [vmem:[#allocation5 + $0x158] sm:$0xff]
    %v191 = vld [vmem:[#allocation5 + $0x160] sm:$0xff]
    %v192 = vld [vmem:[#allocation5 + $0x168] sm:$0xff]
    %v193 = vld [vmem:[#allocation5 + $0x170] sm:$0xff]
    %v194 = vld [vmem:[#allocation5 + $0x178] sm:$0xff]
    %v195 = vld [vmem:[#allocation5 + $0x180] sm:$0xff]
    %v196 = vld [vmem:[#allocation5 + $0x188] sm:$0xff]
    %v197 = vld [vmem:[#allocation5 + $0x190] sm:$0xff]
    %v198 = vld [vmem:[#allocation5 + $0x198] sm:$0xff]
    %v199 = vld [vmem:[#allocation5 + $0x1a0] sm:$0xff]
    %v200 = vld [vmem:[#allocation5 + $0x1a8] sm:$0xff]
    %v201 = vld [vmem:[#allocation5 + $0x1b0] sm:$0xff]
    %v202 = vld [vmem:[#allocation5 + $0x1b8] sm:$0xff]
    %v203 = vld [vmem:[#allocation5 + $0x1c0] sm:$0xff]
    %v204 = vld [vmem:[#allocation5 + $0x1c8] sm:$0xff]
    %v205 = vld [vmem:[#allocation5 + $0x1d0] sm:$0xff]
    %v206 = vld [vmem:[#allocation5 + $0x1d8] sm:$0xff]
    %v207 = vld [vmem:[#allocation5 + $0x1e0] sm:$0xff]
    %v208 = vld [vmem:[#allocation5 + $0x1e8] sm:$0xff]
    %v209 = vld [vmem:[#allocation5 + $0x1f0] sm:$0xff]
    %v210 = vld [vmem:[#allocation5 + $0x1f8] sm:$0xff]
    %v211 = vld [vmem:[#allocation5 + $0x200] sm:$0xff]
    %v212 = vld [vmem:[#allocation5 + $0x208] sm:$0xff]
    %v213 = vld [vmem:[#allocation5 + $0x210] sm:$0xff]
    %v214 = vld [vmem:[#allocation5 + $0x218] sm:$0xff]
    %v215 = vld [vmem:[#allocation5 + $0x220] sm:$0xff]
    %v216 = vld [vmem:[#allocation5 + $0x228] sm:$0xff]
    %v217 = vld [vmem:[#allocation5 + $0x230] sm:$0xff]
    %v218 = vld [vmem:[#allocation5 + $0x238] sm:$0xff]
    %v219 = vld [vmem:[#allocation5 + $0x240] sm:$0xff]
    %v220 = vld [vmem:[#allocation5 + $0x248] sm:$0xff]
    %v221 = vld [vmem:[#allocation5 + $0x250] sm:$0xff]
    %v222 = vld [vmem:[#allocation5 + $0x258] sm:$0xff]
    %v223 = vld [vmem:[#allocation5 + $0x260] sm:$0xff]
    %v224 = vld [vmem:[#allocation5 + $0x268] sm:$0xff]
    %v225 = vld [vmem:[#allocation5 + $0x270] sm:$0xff]
    %v226 = vld [vmem:[#allocation5 + $0x278] sm:$0xff]
    %v227 = vld [vmem:[#allocation5 + $0x280] sm:$0xff]
    %v228 = vld [vmem:[#allocation5 + $0x288] sm:$0xff]
    %v229 = vld [vmem:[#allocation5 + $0x290] sm:$0xff]
    %v230 = vld [vmem:[#allocation5 + $0x298] sm:$0xff]
    %v231 = vld [vmem:[#allocation5 + $0x2a0] sm:$0xff]
    %v232 = vld [vmem:[#allocation5 + $0x2a8] sm:$0xff]
    %v233 = vld [vmem:[#allocation5 + $0x2b0] sm:$0xff]
    %v234 = vld [vmem:[#allocation5 + $0x2b8] sm:$0xff]
    %v235 = vld [vmem:[#allocation5 + $0x2c0] sm:$0xff]
    %v236 = vld [vmem:[#allocation5 + $0x2c8] sm:$0xff]
    %v237 = vld [vmem:[#allocation5 + $0x2d0] sm:$0xff]
    %v238 = vld [vmem:[#allocation5 + $0x2d8] sm:$0xff]
    %v239 = vld [vmem:[#allocation5 + $0x2e0] sm:$0xff]
    %v240 = vld [vmem:[#allocation5 + $0x2e8] sm:$0xff]
    %v241 = vld [vmem:[#allocation5 + $0x2f0] sm:$0xff]
    %v242 = vld [vmem:[#allocation5 + $0x2f8] sm:$0xff]
    %v243 = vld [vmem:[#allocation5 + $0x300] sm:$0xff]
    %v244 = vld [vmem:[#allocation5 + $0x308] sm:$0xff]
    %v245 = vld [vmem:[#allocation5 + $0x310] sm:$0xff]
    %v246 = vld [vmem:[#allocation5 + $0x318] sm:$0xff]
    %v247 = vld [vmem:[#allocation5 + $0x320] sm:$0xff]
    %v248 = vld [vmem:[#allocation5 + $0x328] sm:$0xff]
    %v249 = vld [vmem:[#allocation5 + $0x330] sm:$0xff]
    %v250 = vld [vmem:[#allocation5 + $0x338] sm:$0xff]
    %v251 = vld [vmem:[#allocation5 + $0x340] sm:$0xff]
    %v252 = vld [vmem:[#allocation5 + $0x348] sm:$0xff]
    %v253 = vld [vmem:[#allocation5 + $0x350] sm:$0xff]
    %v254 = vld [vmem:[#allocation5 + $0x358] sm:$0xff]
    %v255 = vld [vmem:[#allocation5 + $0x360] sm:$0xff]
    %v256 = vld [vmem:[#allocation5 + $0x368] sm:$0xff]
    %v257 = vld [vmem:[#allocation5 + $0x370] sm:$0xff]
    %v258 = vld [vmem:[#allocation5 + $0x378] sm:$0xff]
    %v259 = vld [vmem:[#allocation5 + $0x380] sm:$0xff]
    %v260 = vld [vmem:[#allocation5 + $0x388] sm:$0xff]
    %v261 = vld [vmem:[#allocation5 + $0x390] sm:$0xff]
    %v262 = vld [vmem:[#allocation5 + $0x398] sm:$0xff]
    %v263 = vld [vmem:[#allocation5 + $0x3a0] sm:$0xff]
    %v264 = vld [vmem:[#allocation5 + $0x3a8] sm:$0xff]
    %v265 = vld [vmem:[#allocation5 + $0x3b0] sm:$0xff]
    %v266 = vld [vmem:[#allocation5 + $0x3b8] sm:$0xff]
    %v267 = vld [vmem:[#allocation5 + $0x3c0] sm:$0xff]
    %v268 = vld [vmem:[#allocation5 + $0x3c8] sm:$0xff]
    %v269 = vld [vmem:[#allocation5 + $0x3d0] sm:$0xff]
    %v270 = vld [vmem:[#allocation5 + $0x3d8] sm:$0xff]
    %v271 = vld [vmem:[#allocation5 + $0x3e0] sm:$0xff]
    %v272 = vld [vmem:[#allocation5 + $0x3e8] sm:$0xff]
    %v273 = vld [vmem:[#allocation5 + $0x3f0] sm:$0xff]
    %v274 = vld [vmem:[#allocation5 + $0x3f8] sm:$0xff]
    %275 = vmatprep.subr.mxu0 0.0
    %276 = vmatpush1.msra.mxu0 %v162
    %277 = vmatprep.subr.mxu0 0.0
    %278 = vmatpush1.msra.mxu0 %v161
    %279 = vmatprep.subr.mxu0 0.0
    %280 = vmatpush1.msra.mxu0 %v160
    %281 = vmatprep.subr.mxu0 0.0
    %282 = vmatpush1.msra.mxu0 %v159
    %283 = vmatprep.subr.mxu0 0.0
    %284 = vmatpush1.msra.mxu0 %v158
    %285 = vmatprep.subr.mxu0 0.0
    %286 = vmatpush1.msra.mxu0 %v157
    %287 = vmatprep.subr.mxu0 0.0
    %288 = vmatpush1.msra.mxu0 %v156
    %289 = vmatprep.subr.mxu0 0.0
    %290 = vmatpush1.msra.mxu0 %v155
    %291 = vmatprep.subr.mxu0 0.0
    %292 = vmatpush1.msra.mxu0 %v154
    %293 = vmatprep.subr.mxu0 0.0
    %294 = vmatpush1.msra.mxu0 %v153
    %295 = vmatprep.subr.mxu0 0.0
    %296 = vmatpush1.msra.mxu0 %v152
    %297 = vmatprep.subr.mxu0 0.0
    %298 = vmatpush1.msra.mxu0 %v151
    %299 = vmatprep.subr.mxu0 0.0
    %300 = vmatpush1.msra.mxu0 %v150
    %301 = vmatprep.subr.mxu0 0.0
    %302 = vmatpush1.msra.mxu0 %v149
    %303 = vmatprep.subr.mxu0 0.0
    %304 = vmatpush1.msra.mxu0 %v148
    %305 = vmatprep.subr.mxu0 0.0
    %306 = vmatpush1.msra.mxu0 %v147
    %307 = vmatprep.subr.mxu0 0.0
    %308 = vmatpush2.msra.mxu0 %v178
    %309 = vmatprep.subr.mxu0 0.0
    %310 = vmatpush2.msra.mxu0 %v177
    %311 = vmatprep.subr.mxu0 0.0
    %312 = vmatpush2.msra.mxu0 %v176
    %313 = vmatprep.subr.mxu0 0.0
    %314 = vmatpush2.msra.mxu0 %v175
    %315 = vmatprep.subr.mxu0 0.0
    %316 = vmatpush2.msra.mxu0 %v174
    %317 = vmatprep.subr.mxu0 0.0
    %318 = vmatpush2.msra.mxu0 %v173
    %319 = vmatprep.subr.mxu0 0.0
    %320 = vmatpush2.msra.mxu0 %v172
    %321 = vmatprep.subr.mxu0 0.0
    %322 = vmatpush2.msra.mxu0 %v171
    %323 = vmatprep.subr.mxu0 0.0
    %324 = vmatpush2.msra.mxu0 %v170
    %325 = vmatprep.subr.mxu0 0.0
    %326 = vmatpush2.msra.mxu0 %v169
    %327 = vmatprep.subr.mxu0 0.0
    %328 = vmatpush2.msra.mxu0 %v168
    %329 = vmatprep.subr.mxu0 0.0
    %330 = vmatpush2.msra.mxu0 %v167
    %331 = vmatprep.subr.mxu0 0.0
    %332 = vmatpush2.msra.mxu0 %v166
    %333 = vmatprep.subr.mxu0 0.0
    %334 = vmatpush2.msra.mxu0 %v165
    %335 = vmatprep.subr.mxu0 0.0
    %336 = vmatpush2.msra.mxu0 %v164
    %337 = vmatprep.subr.mxu0 0.0
    %338 = vmatpush2.msra.mxu0 %v163
    %339 = vmatprep.mubr.f32.mxu0 %v53
    %340 = vmatmul.mubr.f32.gmra.mxu0 %v45
    %v341 = vpop.f32.mrf.mxu0
    %v342 = vadd.f32 0.0, %v341
    %v343 = vpop.f32.mrf.mxu0
    %344 = vdwg.mxu0
    %345 = vmatprep.subr.mxu0 0.0
    %346 = vmatpush1.msra.mxu0 %v194
    %347 = vmatprep.subr.mxu0 0.0
    %348 = vmatpush1.msra.mxu0 %v193
    %349 = vmatprep.subr.mxu0 0.0
    %350 = vmatpush1.msra.mxu0 %v192
    %351 = vmatprep.subr.mxu0 0.0
    %352 = vmatpush1.msra.mxu0 %v191
    %353 = vmatprep.subr.mxu0 0.0
    %354 = vmatpush1.msra.mxu0 %v190
    %355 = vmatprep.subr.mxu0 0.0
    %356 = vmatpush1.msra.mxu0 %v189
    %357 = vmatprep.subr.mxu0 0.0
    %358 = vmatpush1.msra.mxu0 %v188
    %359 = vmatprep.subr.mxu0 0.0
    %360 = vmatpush1.msra.mxu0 %v187
    %361 = vmatprep.subr.mxu0 0.0
    %362 = vmatpush1.msra.mxu0 %v186
    %363 = vmatprep.subr.mxu0 0.0
    %364 = vmatpush1.msra.mxu0 %v185
    %365 = vmatprep.subr.mxu0 0.0
    %366 = vmatpush1.msra.mxu0 %v184
    %367 = vmatprep.subr.mxu0 0.0
    %368 = vmatpush1.msra.mxu0 %v183
    %369 = vmatprep.subr.mxu0 0.0
    %370 = vmatpush1.msra.mxu0 %v182
    %371 = vmatprep.subr.mxu0 0.0
    %372 = vmatpush1.msra.mxu0 %v181
    %373 = vmatprep.subr.mxu0 0.0
    %374 = vmatpush1.msra.mxu0 %v180
    %375 = vmatprep.subr.mxu0 0.0
    %376 = vmatpush1.msra.mxu0 %v179
    %377 = vmatprep.subr.mxu0 0.0
    %378 = vmatpush2.msra.mxu0 %v210
    %379 = vmatprep.subr.mxu0 0.0
    %380 = vmatpush2.msra.mxu0 %v209
    %381 = vmatprep.subr.mxu0 0.0
    %382 = vmatpush2.msra.mxu0 %v208
    %383 = vmatprep.subr.mxu0 0.0
    %384 = vmatpush2.msra.mxu0 %v207
    %385 = vmatprep.subr.mxu0 0.0
    %386 = vmatpush2.msra.mxu0 %v206
    %387 = vmatprep.subr.mxu0 0.0
    %388 = vmatpush2.msra.mxu0 %v205
    %389 = vmatprep.subr.mxu0 0.0
    %390 = vmatpush2.msra.mxu0 %v204
    %391 = vmatprep.subr.mxu0 0.0
    %392 = vmatpush2.msra.mxu0 %v203
    %393 = vmatprep.subr.mxu0 0.0
    %394 = vmatpush2.msra.mxu0 %v202
    %395 = vmatprep.subr.mxu0 0.0
    %396 = vmatpush2.msra.mxu0 %v201
    %397 = vmatprep.subr.mxu0 0.0
    %398 = vmatpush2.msra.mxu0 %v200
    %399 = vmatprep.subr.mxu0 0.0
    %400 = vmatpush2.msra.mxu0 %v199
    %401 = vmatprep.subr.mxu0 0.0
    %402 = vmatpush2.msra.mxu0 %v198
    %403 = vmatprep.subr.mxu0 0.0
    %404 = vmatpush2.msra.mxu0 %v197
    %405 = vmatprep.subr.mxu0 0.0
    %406 = vmatpush2.msra.mxu0 %v196
    %407 = vmatprep.subr.mxu0 0.0
    %408 = vmatpush2.msra.mxu0 %v195
    %409 = vmatprep.mubr.f32.mxu0 %v54
    %410 = vmatmul.mubr.f32.gmra.mxu0 %v52
    %v411 = vpop.f32.mrf.mxu0
    %v412 = vadd.f32 %v342, %v411
    %v413 = vpop.f32.mrf.mxu0
    %414 = vdwg.mxu0
    %415 = vmatprep.subr.mxu0 0.0
    %416 = vmatpush1.msra.mxu0 %v226
    %417 = vmatprep.subr.mxu0 0.0
    %418 = vmatpush1.msra.mxu0 %v225
    %419 = vmatprep.subr.mxu0 0.0
    %420 = vmatpush1.msra.mxu0 %v224
    %421 = vmatprep.subr.mxu0 0.0
    %422 = vmatpush1.msra.mxu0 %v223
    %423 = vmatprep.subr.mxu0 0.0
    %424 = vmatpush1.msra.mxu0 %v222
    %425 = vmatprep.subr.mxu0 0.0
    %426 = vmatpush1.msra.mxu0 %v221
    %427 = vmatprep.subr.mxu0 0.0
    %428 = vmatpush1.msra.mxu0 %v220
    %429 = vmatprep.subr.mxu0 0.0
    %430 = vmatpush1.msra.mxu0 %v219
    %431 = vmatprep.subr.mxu0 0.0
    %432 = vmatpush1.msra.mxu0 %v218
    %433 = vmatprep.subr.mxu0 0.0
    %434 = vmatpush1.msra.mxu0 %v217
    %435 = vmatprep.subr.mxu0 0.0
    %436 = vmatpush1.msra.mxu0 %v216
    %437 = vmatprep.subr.mxu0 0.0
    %438 = vmatpush1.msra.mxu0 %v215
    %439 = vmatprep.subr.mxu0 0.0
    %440 = vmatpush1.msra.mxu0 %v214
    %441 = vmatprep.subr.mxu0 0.0
    %442 = vmatpush1.msra.mxu0 %v213
    %443 = vmatprep.subr.mxu0 0.0
    %444 = vmatpush1.msra.mxu0 %v212
    %445 = vmatprep.subr.mxu0 0.0
    %446 = vmatpush1.msra.mxu0 %v211
    %447 = vmatprep.subr.mxu0 0.0
    %448 = vmatpush2.msra.mxu0 %v242
    %449 = vmatprep.subr.mxu0 0.0
    %450 = vmatpush2.msra.mxu0 %v241
    %451 = vmatprep.subr.mxu0 0.0
    %452 = vmatpush2.msra.mxu0 %v240
    %453 = vmatprep.subr.mxu0 0.0
    %454 = vmatpush2.msra.mxu0 %v239
    %455 = vmatprep.subr.mxu0 0.0
    %456 = vmatpush2.msra.mxu0 %v238
    %457 = vmatprep.subr.mxu0 0.0
    %458 = vmatpush2.msra.mxu0 %v237
    %459 = vmatprep.subr.mxu0 0.0
    %460 = vmatpush2.msra.mxu0 %v236
    %461 = vmatprep.subr.mxu0 0.0
    %462 = vmatpush2.msra.mxu0 %v235
    %463 = vmatprep.subr.mxu0 0.0
    %464 = vmatpush2.msra.mxu0 %v234
    %465 = vmatprep.subr.mxu0 0.0
    %466 = vmatpush2.msra.mxu0 %v233
    %467 = vmatprep.subr.mxu0 0.0
    %468 = vmatpush2.msra.mxu0 %v232
    %469 = vmatprep.subr.mxu0 0.0
    %470 = vmatpush2.msra.mxu0 %v231
    %471 = vmatprep.subr.mxu0 0.0
    %472 = vmatpush2.msra.mxu0 %v230
    %473 = vmatprep.subr.mxu0 0.0
    %474 = vmatpush2.msra.mxu0 %v229
    %475 = vmatprep.subr.mxu0 0.0
    %476 = vmatpush2.msra.mxu0 %v228
    %477 = vmatprep.subr.mxu0 0.0
    %478 = vmatpush2.msra.mxu0 %v227
    %479 = vmatprep.mubr.f32.mxu0 %v70
    %480 = vmatmul.mubr.f32.gmra.mxu0 %v62
    %v481 = vpop.f32.mrf.mxu0
    %v482 = vadd.f32 %v412, %v481
    %v483 = vpop.f32.mrf.mxu0
    %484 = vdwg.mxu0
    %485 = vmatprep.subr.mxu0 0.0
    %486 = vmatpush1.msra.mxu0 %v258
    %487 = vmatprep.subr.mxu0 0.0
    %488 = vmatpush1.msra.mxu0 %v257
    %489 = vmatprep.subr.mxu0 0.0
    %490 = vmatpush1.msra.mxu0 %v256
    %491 = vmatprep.subr.mxu0 0.0
    %492 = vmatpush1.msra.mxu0 %v255
    %493 = vmatprep.subr.mxu0 0.0
    %494 = vmatpush1.msra.mxu0 %v254
    %495 = vmatprep.subr.mxu0 0.0
    %496 = vmatpush1.msra.mxu0 %v253
    %497 = vmatprep.subr.mxu0 0.0
    %498 = vmatpush1.msra.mxu0 %v252
    %499 = vmatprep.subr.mxu0 0.0
    %500 = vmatpush1.msra.mxu0 %v251
    %501 = vmatprep.subr.mxu0 0.0
    %502 = vmatpush1.msra.mxu0 %v250
    %503 = vmatprep.subr.mxu0 0.0
    %504 = vmatpush1.msra.mxu0 %v249
    %505 = vmatprep.subr.mxu0 0.0
    %506 = vmatpush1.msra.mxu0 %v248
    %507 = vmatprep.subr.mxu0 0.0
    %508 = vmatpush1.msra.mxu0 %v247
    %509 = vmatprep.subr.mxu0 0.0
    %510 = vmatpush1.msra.mxu0 %v246
    %511 = vmatprep.subr.mxu0 0.0
    %512 = vmatpush1.msra.mxu0 %v245
    %513 = vmatprep.subr.mxu0 0.0
    %514 = vmatpush1.msra.mxu0 %v244
    %515 = vmatprep.subr.mxu0 0.0
    %516 = vmatpush1.msra.mxu0 %v243
    %517 = vmatprep.subr.mxu0 0.0
    %518 = vmatpush2.msra.mxu0 %v274
    %519 = vmatprep.subr.mxu0 0.0
    %520 = vmatpush2.msra.mxu0 %v273
    %521 = vmatprep.subr.mxu0 0.0
    %522 = vmatpush2.msra.mxu0 %v272
    %523 = vmatprep.subr.mxu0 0.0
    %524 = vmatpush2.msra.mxu0 %v271
    %525 = vmatprep.subr.mxu0 0.0
    %526 = vmatpush2.msra.mxu0 %v270
    %527 = vmatprep.subr.mxu0 0.0
    %528 = vmatpush2.msra.mxu0 %v269
    %529 = vmatprep.subr.mxu0 0.0
    %530 = vmatpush2.msra.mxu0 %v268
    %531 = vmatprep.subr.mxu0 0.0
    %532 = vmatpush2.msra.mxu0 %v267
    %533 = vmatprep.subr.mxu0 0.0
    %534 = vmatpush2.msra.mxu0 %v266
    %535 = vmatprep.subr.mxu0 0.0
    %536 = vmatpush2.msra.mxu0 %v265
    %537 = vmatprep.subr.mxu0 0.0
    %538 = vmatpush2.msra.mxu0 %v264
    %539 = vmatprep.subr.mxu0 0.0
    %540 = vmatpush2.msra.mxu0 %v263
    %541 = vmatprep.subr.mxu0 0.0
    %542 = vmatpush2.msra.mxu0 %v262
    %543 = vmatprep.subr.mxu0 0.0
    %544 = vmatpush2.msra.mxu0 %v261
    %545 = vmatprep.subr.mxu0 0.0
    %546 = vmatpush2.msra.mxu0 %v260
    %547 = vmatprep.subr.mxu0 0.0
    %548 = vmatpush2.msra.mxu0 %v259
    %549 = vmatprep.mubr.f32.mxu0 %v71
    %550 = vmatmul.mubr.f32.gmra.mxu0 %v69
    %v551 = vpop.f32.mrf.mxu0
    %v552 = vadd.f32 %v482, %v551
    %v553 = vpop.f32.mrf.mxu0
    %554 = vdwg.mxu0
    %v555 = vadd.f32 %v146, %v552
    %556 = vst [vmem:[#allocation2] sm:$0x3] %v555
    // Predicated region
    $region30: #{_lambda_.1} parent=1 // pred_check
      %p557 = pneg %p31
    $region31: #{_lambda_.1} parent=1 // pred_check_branch
      %559 = sbr.rel (%p557) target = $region33
    $region32: #{_lambda_.1} parent=1 // pred_region
      %v560 = vlaneseq
      %v561 = vand.u32 %v560, 127
      %v562 = vld [vmem:[#allocation3] sm:$0x1]
      %v563 = vld [vmem:[#allocation4] sm:$0x1]
      %v564 = vsub.f32 %v563, %v562
      %v565 = vrcp.pop %v564
      %v566 = vmul.f32 1.0, %v565
      %v567 = vld [vmem:[#allocation2] sm:$0x3]
      %v568 = vld [vmem:[%s2] sm:$0x1]
      %570 = vset.pattern.permute.xlu0 0
      %571 = vperm.xlu0 %570, %v562
      %v572 = vpop.permute.xlu0 %571
      %v574 = vlaneseq
      %v575 = vshrl.u32 %v574, 7
      %v576 = vsub.s32 0, %v575
      %v577 = vrot.slane %v572, %v576
      %v578 = vmul.f32 %v577, %v568
      %v580 = vlaneseq
      %v581 = vshrl.u32 %v580, 7
      %v582 = vsub.s32 0, %v581
      %v583 = vrot.slane %v578, %v582
      %v585 = vsub.f32 %v567, %v583
      %v587 = vlaneseq
      %v588 = vshrl.u32 %v587, 7
      %v589 = vsub.s32 0, %v588
      %v590 = vrot.slane %v566, %v589
      %591 = vset.pattern.permute.xlu0 0
      %592 = vperm.xlu0 %591, %v590
      %v593 = vpop.permute.xlu0 %592
      %v595 = vmul.f32 %v585, %v593
      %v596 = vand.u32 2147483647, %v595
      %vm597 = vcmask 1040384
      %v598 = vsel %vm597, %v596, -inf
      %599 = vmax.xlane.f32.xlu0 %v598
      %v600 = vpop.xlane.xlu0 %599
      %vm601 = vcmp.eq.f32.partialorder %v596, %v600
      %v602 = vsel %vm601, %v561, 128
      %v603 = vsel %vm597, %v602, 2147483647
      %v604 = vand.u32 %v603, 65535
      %v605 = vshra.s32 %v603, 16
      %v606 = vcvt.s32.f32 %v604
      %v607 = vcvt.s32.f32 %v605
      %608 = vmin.xlane.f32.xlu0 %v607
      %v609 = vpop.xlane.xlu0 %608
      %vm610 = vcmp.eq.f32.partialorder %v607, %v609
      %v611 = vsel %vm610, %v606, inf
      %612 = vmin.xlane.f32.xlu0 %v611
      %v613 = vpop.xlane.xlu0 %612
      %v614 = vcvt.f32.s32 %v613
      %v615 = vcvt.f32.s32 %v609
      %v616 = vshll.u32 %v615, 16
      %v617 = vadd.s32 %v616, %v614
      %vm618 = vcmp.eq.s32.totalorder %v561, %v617
      %v619 = vsel %vm618, 1, 0
      %v620 = vcvt.s32.f32 %v619
      %v621 = vadd.f32 %v620, 0.0
      %v622 = vsel %vm618, -inf, %v596
      %v623 = vsel %vm597, %v622, -inf
      %624 = vmax.xlane.f32.xlu0 %v623
      %v625 = vpop.xlane.xlu0 %624
      %vm626 = vcmp.eq.f32.partialorder %v622, %v625
      %v627 = vsel %vm626, %v561, 128
      %v628 = vsel %vm597, %v627, 2147483647
      %v629 = vand.u32 %v628, 65535
      %v630 = vshra.s32 %v628, 16
      %v631 = vcvt.s32.f32 %v629
      %v632 = vcvt.s32.f32 %v630
      %633 = vmin.xlane.f32.xlu0 %v632
      %v634 = vpop.xlane.xlu0 %633
      %vm635 = vcmp.eq.f32.partialorder %v632, %v634
      %v636 = vsel %vm635, %v631, inf
      %637 = vmin.xlane.f32.xlu0 %v636
      %v638 = vpop.xlane.xlu0 %637
      %v639 = vcvt.f32.s32 %v638
      %v640 = vcvt.f32.s32 %v634
      %v641 = vshll.u32 %v640, 16
      %v642 = vadd.s32 %v641, %v639
      %vm643 = vcmp.eq.s32.totalorder %v561, %v642
      %v644 = vsel %vm643, 1, 0
      %v645 = vcvt.s32.f32 %v644
      %v646 = vadd.f32 %v621, %v645
      %v647 = vsel %vm643, -inf, %v622
      %v648 = vsel %vm597, %v647, -inf
      %649 = vmax.xlane.f32.xlu0 %v648
      %v650 = vpop.xlane.xlu0 %649
      %vm651 = vcmp.eq.f32.partialorder %v647, %v650
      %v652 = vsel %vm651, %v561, 128
      %v653 = vsel %vm597, %v652, 2147483647
      %v654 = vand.u32 %v653, 65535
      %v655 = vshra.s32 %v653, 16
      %v656 = vcvt.s32.f32 %v654
      %v657 = vcvt.s32.f32 %v655
      %658 = vmin.xlane.f32.xlu0 %v657
      %v659 = vpop.xlane.xlu0 %658
      %vm660 = vcmp.eq.f32.partialorder %v657, %v659
      %v661 = vsel %vm660, %v656, inf
      %662 = vmin.xlane.f32.xlu0 %v661
      %v663 = vpop.xlane.xlu0 %662
      %v664 = vcvt.f32.s32 %v663
      %v665 = vcvt.f32.s32 %v659
      %v666 = vshll.u32 %v665, 16
      %v667 = vadd.s32 %v666, %v664
      %vm668 = vcmp.eq.s32.totalorder %v561, %v667
      %v669 = vsel %vm668, 1, 0
      %v670 = vcvt.s32.f32 %v669
      %v671 = vadd.f32 %v646, %v670
      %v672 = vsel %vm668, -inf, %v647
      %v673 = vsel %vm597, %v672, -inf
      %674 = vmax.xlane.f32.xlu0 %v673
      %v675 = vpop.xlane.xlu0 %674
      %vm676 = vcmp.eq.f32.partialorder %v672, %v675
      %v677 = vsel %vm676, %v561, 128
      %v678 = vsel %vm597, %v677, 2147483647
      %v679 = vand.u32 %v678, 65535
      %v680 = vshra.s32 %v678, 16
      %v681 = vcvt.s32.f32 %v679
      %v682 = vcvt.s32.f32 %v680
      %683 = vmin.xlane.f32.xlu0 %v682
      %v684 = vpop.xlane.xlu0 %683
      %vm685 = vcmp.eq.f32.partialorder %v682, %v684
      %v686 = vsel %vm685, %v681, inf
      %687 = vmin.xlane.f32.xlu0 %v686
      %v688 = vpop.xlane.xlu0 %687
      %v689 = vcvt.f32.s32 %v688
      %v690 = vcvt.f32.s32 %v684
      %v691 = vshll.u32 %v690, 16
      %v692 = vadd.s32 %v691, %v689
      %vm693 = vcmp.eq.s32.totalorder %v561, %v692
      %v694 = vsel %vm693, 1, 0
      %v695 = vcvt.s32.f32 %v694
      %v696 = vadd.f32 %v671, %v695
      %v697 = vmul.f32 %v595, %v696
      %698 = vst [vmem:[#allocation8] sm:$0x1] %v697
      %v699 = vadd.f32 %v696, 0.0
      %v700 = vsub.f32 1.0, %v699
      %v702 = vrot.slane %v700, 7
      %v704 = vmul.f32 %v596, %v702
      %vm705 = vcmask 1041409
      %v706 = vsel %vm705, %v704, -inf
      %707 = vmax.xlane.f32.xlu0 %v706
      %v708 = vpop.xlane.xlu0 %707
      %vm709 = vcmp.eq.f32.partialorder %v704, %v708
      %v710 = vsel %vm709, %v561, 128
      %v711 = vsel %vm705, %v710, 2147483647
      %v712 = vand.u32 %v711, 65535
      %v713 = vshra.s32 %v711, 16
      %v714 = vcvt.s32.f32 %v712
      %v715 = vcvt.s32.f32 %v713
      %716 = vmin.xlane.f32.xlu0 %v715
      %v717 = vpop.xlane.xlu0 %716
      %vm718 = vcmp.eq.f32.partialorder %v715, %v717
      %v719 = vsel %vm718, %v714, inf
      %720 = vmin.xlane.f32.xlu0 %v719
      %v721 = vpop.xlane.xlu0 %720
      %v722 = vcvt.f32.s32 %v721
      %v723 = vcvt.f32.s32 %v717
      %v724 = vshll.u32 %v723, 16
      %v725 = vadd.s32 %v724, %v722
      %vm726 = vcmp.eq.s32.totalorder %v561, %v725
      %v727 = vsel %vm726, 1, 0
      %v728 = vcvt.s32.f32 %v727
      %v729 = vadd.f32 %v728, 0.0
      %v730 = vsel %vm726, -inf, %v704
      %v731 = vsel %vm705, %v730, -inf
      %732 = vmax.xlane.f32.xlu0 %v731
      %v733 = vpop.xlane.xlu0 %732
      %vm734 = vcmp.eq.f32.partialorder %v730, %v733
      %v735 = vsel %vm734, %v561, 128
      %v736 = vsel %vm705, %v735, 2147483647
      %v737 = vand.u32 %v736, 65535
      %v738 = vshra.s32 %v736, 16
      %v739 = vcvt.s32.f32 %v737
      %v740 = vcvt.s32.f32 %v738
      %741 = vmin.xlane.f32.xlu0 %v740
      %v742 = vpop.xlane.xlu0 %741
      %vm743 = vcmp.eq.f32.partialorder %v740, %v742
      %v744 = vsel %vm743, %v739, inf
      %745 = vmin.xlane.f32.xlu0 %v744
      %v746 = vpop.xlane.xlu0 %745
      %v747 = vcvt.f32.s32 %v746
      %v748 = vcvt.f32.s32 %v742
      %v749 = vshll.u32 %v748, 16
      %v750 = vadd.s32 %v749, %v747
      %vm751 = vcmp.eq.s32.totalorder %v561, %v750
      %v752 = vsel %vm751, 1, 0
      %v753 = vcvt.s32.f32 %v752
      %v754 = vadd.f32 %v729, %v753
      %v755 = vsel %vm751, -inf, %v730
      %v756 = vsel %vm705, %v755, -inf
      %757 = vmax.xlane.f32.xlu0 %v756
      %v758 = vpop.xlane.xlu0 %757
      %vm759 = vcmp.eq.f32.partialorder %v755, %v758
      %v760 = vsel %vm759, %v561, 128
      %v761 = vsel %vm705, %v760, 2147483647
      %v762 = vand.u32 %v761, 65535
      %v763 = vshra.s32 %v761, 16
      %v764 = vcvt.s32.f32 %v762
      %v765 = vcvt.s32.f32 %v763
      %766 = vmin.xlane.f32.xlu0 %v765
      %v767 = vpop.xlane.xlu0 %766
      %vm768 = vcmp.eq.f32.partialorder %v765, %v767
      %v769 = vsel %vm768, %v764, inf
      %770 = vmin.xlane.f32.xlu0 %v769
      %v771 = vpop.xlane.xlu0 %770
      %v772 = vcvt.f32.s32 %v771
      %v773 = vcvt.f32.s32 %v767
      %v774 = vshll.u32 %v773, 16
      %v775 = vadd.s32 %v774, %v772
      %vm776 = vcmp.eq.s32.totalorder %v561, %v775
      %v777 = vsel %vm776, 1, 0
      %v778 = vcvt.s32.f32 %v777
      %v779 = vadd.f32 %v754, %v778
      %v780 = vsel %vm776, -inf, %v755
      %v781 = vsel %vm705, %v780, -inf
      %782 = vmax.xlane.f32.xlu0 %v781
      %v783 = vpop.xlane.xlu0 %782
      %vm784 = vcmp.eq.f32.partialorder %v780, %v783
      %v785 = vsel %vm784, %v561, 128
      %v786 = vsel %vm705, %v785, 2147483647
      %v787 = vand.u32 %v786, 65535
      %v788 = vshra.s32 %v786, 16
      %v789 = vcvt.s32.f32 %v787
      %v790 = vcvt.s32.f32 %v788
      %791 = vmin.xlane.f32.xlu0 %v790
      %v792 = vpop.xlane.xlu0 %791
      %vm793 = vcmp.eq.f32.partialorder %v790, %v792
      %v794 = vsel %vm793, %v789, inf
      %795 = vmin.xlane.f32.xlu0 %v794
      %v796 = vpop.xlane.xlu0 %795
      %v797 = vcvt.f32.s32 %v796
      %v798 = vcvt.f32.s32 %v792
      %v799 = vshll.u32 %v798, 16
      %v800 = vadd.s32 %v799, %v797
      %vm801 = vcmp.eq.s32.totalorder %v561, %v800
      %v802 = vsel %vm801, 1, 0
      %v803 = vcvt.s32.f32 %v802
      %v804 = vadd.f32 %v779, %v803
      %v805 = vmul.f32 %v595, %v804
      %806 = vst [vmem:[#allocation8] sm:$0x2] %v805
      %v807 = vld [vmem:[#allocation8] sm:$0x3]
      %v808 = vsel %vm80, %v807, -inf
      %809 = vmax.xlane.f32.xlu0 %v808
      %v810 = vpop.xlane.xlu0 %809
      %vm811 = vcmp.eq.f32.partialorder %v807, %v810
      %v812 = vsel %vm811, %v561, 128
      %v813 = vsel %vm80, %v812, 2147483647
      %v814 = vand.u32 %v813, 65535
      %v815 = vshra.s32 %v813, 16
      %v816 = vcvt.s32.f32 %v814
      %v817 = vcvt.s32.f32 %v815
      %818 = vmin.xlane.f32.xlu0 %v817
      %v819 = vpop.xlane.xlu0 %818
      %vm820 = vcmp.eq.f32.partialorder %v817, %v819
      %v821 = vsel %vm820, %v816, inf
      %822 = vmin.xlane.f32.xlu0 %v821
      %v823 = vpop.xlane.xlu0 %822
      %v824 = vcvt.f32.s32 %v823
      %v825 = vcvt.f32.s32 %v819
      %v826 = vshll.u32 %v825, 16
      %v827 = vadd.s32 %v826, %v824
      %vm828 = vcmp.eq.s32.totalorder %v561, %v827
      %v829 = vsel %vm828, 1, 0
      %v830 = vcvt.s32.f32 %v829
      %v831 = vadd.f32 %v830, 0.0
      %v832 = vsel %vm828, -inf, %v807
      %v833 = vsel %vm80, %v832, -inf
      %834 = vmax.xlane.f32.xlu0 %v833
      %v835 = vpop.xlane.xlu0 %834
      %vm836 = vcmp.eq.f32.partialorder %v832, %v835
      %v837 = vsel %vm836, %v561, 128
      %v838 = vsel %vm80, %v837, 2147483647
      %v839 = vand.u32 %v838, 65535
      %v840 = vshra.s32 %v838, 16
      %v841 = vcvt.s32.f32 %v839
      %v842 = vcvt.s32.f32 %v840
      %843 = vmin.xlane.f32.xlu0 %v842
      %v844 = vpop.xlane.xlu0 %843
      %vm845 = vcmp.eq.f32.partialorder %v842, %v844
      %v846 = vsel %vm845, %v841, inf
      %847 = vmin.xlane.f32.xlu0 %v846
      %v848 = vpop.xlane.xlu0 %847
      %v849 = vcvt.f32.s32 %v848
      %v850 = vcvt.f32.s32 %v844
      %v851 = vshll.u32 %v850, 16
      %v852 = vadd.s32 %v851, %v849
      %vm853 = vcmp.eq.s32.totalorder %v561, %v852
      %v854 = vsel %vm853, 1, 0
      %v855 = vcvt.s32.f32 %v854
      %v856 = vadd.f32 %v831, %v855
      %v857 = vsel %vm853, -inf, %v832
      %v858 = vsel %vm80, %v857, -inf
      %859 = vmax.xlane.f32.xlu0 %v858
      %v860 = vpop.xlane.xlu0 %859
      %vm861 = vcmp.eq.f32.partialorder %v857, %v860
      %v862 = vsel %vm861, %v561, 128
      %v863 = vsel %vm80, %v862, 2147483647
      %v864 = vand.u32 %v863, 65535
      %v865 = vshra.s32 %v863, 16
      %v866 = vcvt.s32.f32 %v864
      %v867 = vcvt.s32.f32 %v865
      %868 = vmin.xlane.f32.xlu0 %v867
      %v869 = vpop.xlane.xlu0 %868
      %vm870 = vcmp.eq.f32.partialorder %v867, %v869
      %v871 = vsel %vm870, %v866, inf
      %872 = vmin.xlane.f32.xlu0 %v871
      %v873 = vpop.xlane.xlu0 %872
      %v874 = vcvt.f32.s32 %v873
      %v875 = vcvt.f32.s32 %v869
      %v876 = vshll.u32 %v875, 16
      %v877 = vadd.s32 %v876, %v874
      %vm878 = vcmp.eq.s32.totalorder %v561, %v877
      %v879 = vsel %vm878, 1, 0
      %v880 = vcvt.s32.f32 %v879
      %v881 = vadd.f32 %v856, %v880
      %v882 = vsel %vm878, -inf, %v857
      %v883 = vsel %vm80, %v882, -inf
      %884 = vmax.xlane.f32.xlu0 %v883
      %v885 = vpop.xlane.xlu0 %884
      %vm886 = vcmp.eq.f32.partialorder %v882, %v885
      %v887 = vsel %vm886, %v561, 128
      %v888 = vsel %vm80, %v887, 2147483647
      %v889 = vand.u32 %v888, 65535
      %v890 = vshra.s32 %v888, 16
      %v891 = vcvt.s32.f32 %v889
      %v892 = vcvt.s32.f32 %v890
      %893 = vmin.xlane.f32.xlu0 %v892
      %v894 = vpop.xlane.xlu0 %893
      %vm895 = vcmp.eq.f32.partialorder %v892, %v894
      %v896 = vsel %vm895, %v891, inf
      %897 = vmin.xlane.f32.xlu0 %v896
      %v898 = vpop.xlane.xlu0 %897
      %v899 = vcvt.f32.s32 %v898
      %v900 = vcvt.f32.s32 %v894
      %v901 = vshll.u32 %v900, 16
      %v902 = vadd.s32 %v901, %v899
      %vm903 = vcmp.eq.s32.totalorder %v561, %v902
      %v904 = vsel %vm903, 1, 0
      %v905 = vcvt.s32.f32 %v904
      %v906 = vadd.f32 %v881, %v905
      %907 = vst [vmem:[#allocation8] sm:$0x3] %v906
    $region33: #{_lambda_.1} parent=1 // pred_fallthru
      _
    // Predicated region
    $region34: #{_lambda_.1} parent=1 // pred_check
      _
    $region35: #{_lambda_.1} parent=1 // pred_check_branch
      %909 = sbr.rel (0) target = $region37
    $region36: #{_lambda_.1} parent=1 // pred_region
      %s911 = ssub.s32 32, 32
      %912 = vsyncadd [#allocation7], %s911
      %s914 = sshll.u32 [#allocation8], 4
      %s915 = int_to_ptr.vmem [resolvable:$true] %s914
      %917 = dma.vmem_to_hbm [thread:$0]  %s915, 32, %s3, [#allocation7]
    $region37: #{_lambda_.1} parent=1 // pred_fallthru
      _
    // Predicated region
    $region38: #{_lambda_.1} parent=1 // pred_check
      _
    $region39: #{_lambda_.1} parent=1 // pred_check_branch
      %919 = sbr.rel (0) target = $region41
    $region40: #{_lambda_.1} parent=1 // pred_region
      %920 = dma.done [#allocation7], 32
    $region41: #{_lambda_.1} parent=1 // pred_fallthru
      _
    %921 = vsyncpa [#allocation6], 1
    %922 = vsyncpa [#allocation7], 1

</llo_original>
